<compile_context>
chip_gen: v7x
topology: tpu7x:2x2x1
jax: 0.10.0
libtpu: 0.0.40
codegen_flags: <defaults>
</compile_context>

<pallas_src>
import math

import jax
import jax.numpy as jnp
from jax import lax
from jax.experimental import pallas as pl
from jax.experimental.pallas import tpu as pltpu

H1 = 196            # FC1 output width (torch)
H1_PAD = 208        # FC1 width padded to a sublane multiple (8 and 16)
H2 = 128            # FC2 output width
H3 = 128            # FC3 output width
H4 = 64             # FC4 output width

MAX_TB = 4096       # v7x-safe tile cap (intermediates + buffers << 32 MiB)


def _leaky_relu(x, slope=0.2):
    # max(x, slope*x) == leaky_relu for 0 < slope < 1; mul+max (2 VALU ops)
    # instead of cmp+mul+select (3 VALU ops).
    return jnp.maximum(x, slope * x)


def _critic_kernel(obs_ref, acts_ref, w1_ref, b1_ref, w2_ref, b2_ref,
                   w3a_ref, w3b_ref, b3_ref, w4_ref, b4_ref,
                   w5_ref, b5_ref, out_ref):
    cdt = w1_ref.dtype                      # compute/elementwise dtype (f32 or bf16)
    dn = (((1,), (1,)), ((), ()))           # contract last dims: W @ X.T on the MXU

    obs = obs_ref[...].astype(cdt)          # (tb, obs_dim), natural layout
    acts = acts_ref[...].astype(cdt)        # (tb, act_dim)

    # FC1 / FC2: (H, feat) x (tb, feat) -> (H, tb); f32 MXU accumulation.
    h1 = lax.dot_general(w1_ref[...], obs, dn, preferred_element_type=jnp.float32)
    h2 = lax.dot_general(w2_ref[...], acts, dn, preferred_element_type=jnp.float32)
    # bias + leaky in the compute dtype (bf16 on the fast path -> 2x VALU rate).
    h1 = _leaky_relu(h1.astype(cdt) + b1_ref[...])          # (H1_PAD, tb)
    h2 = _leaky_relu(h2.astype(cdt) + b2_ref[...])          # (H2, tb)

    # FC3 over the (implicitly concatenated) [h1; h2] activation:
    # split into two matmuls so no concat / padded-K copy is ever materialized.
    h3 = jnp.dot(w3a_ref[...], h1, preferred_element_type=jnp.float32)
    h3 = h3 + jnp.dot(w3b_ref[...], h2, preferred_element_type=jnp.float32)
    h3 = _leaky_relu(h3.astype(cdt) + b3_ref[...])          # (H3, tb)

    # FC4: small tail, keep elementwise in f32 for output precision.
    h4 = jnp.dot(w4_ref[...], h3, preferred_element_type=jnp.float32)
    h4 = _leaky_relu(h4 + b4_ref[...])                      # (64, tb), f32

    # FC5 (64 -> 1) as broadcast-multiply + sublane reduction (no 1-row matmul).
    out = jnp.sum(h4 * w5_ref[...], axis=0, keepdims=True) + b5_ref[...]
    out_ref[...] = out.astype(out_ref.dtype)                # (1, tb), lane-dense store


def _round_up(x, m):
    return -(-x // m) * m


def critic_forward(obs, acts, packed, *, batch_tile=2048):
    """Fused Critic forward.

    obs:  (B, n_agent * dim_observation) float32
    acts: (B, n_agent * dim_action)      float32
    packed: params from pack_critic_params() (f32 or bf16 compute dtype).
    batch_tile: requested rows per grid step (rounded to a multiple of 128,
        capped at 4096 for v7x VMEM, and capped so grid >= 2 when the batch
        allows -- enables megacore sharding on v7x).  Sweep 1024/2048/4096.
    Returns (B, 1) float32, same math as torch Critic.forward.
    """
    B, obs_dim = obs.shape
    act_dim = acts.shape[1]

    tb = max(128, (int(batch_tile) // 128) * 128)
    tb = min(tb, MAX_TB)
    b128 = _round_up(B, 128)
    tb = min(tb, b128)
    if b128 >= 256:
        # Guarantee at least two grid steps so ("parallel",) can use both
        # TensorCores on v7x; free on single-core chips.
        tb = min(tb, max(128, ((b128 // 2) // 128) * 128))
    padded_b = _round_up(B, tb)
    grid = (padded_b // tb,)

    if padded_b != B:
        # Only fires for ragged batches; pick B % tile == 0 for peak perf.
        pad = padded_b - B
        obs = jnp.pad(obs, ((0, pad), (0, 0)))
        acts = jnp.pad(acts, ((0, pad), (0, 0)))

    weights = (packed["w1"], packed["b1"], packed["w2"], packed["b2"],
               packed["w3a"], packed["w3b"], packed["b3"],
               packed["w4"], packed["b4"], packed["w5"], packed["b5"])

    in_specs = [pl.BlockSpec((tb, obs_dim), lambda i: (i, 0)),
                pl.BlockSpec((tb, act_dim), lambda i: (i, 0))]
    # Weights/biases: full-array blocks, constant index map (resident in VMEM).
    in_specs += [pl.BlockSpec(w.shape, lambda i: (0, 0)) for w in weights]
    out_specs = pl.BlockSpec((1, tb), lambda i: (0, i))

    weight_bytes = int(sum(int(w.size) * w.dtype.itemsize for w in weights))
    flops_per_row = 2 * (H1_PAD * obs_dim + H2 * act_dim
                         + H3 * H1_PAD + H3 * H2 + H4 * H3 + H4)
    cost = pl.CostEstimate(
        flops=padded_b * flops_per_row,
        transcendentals=0,
        bytes_accessed=padded_b * (obs_dim + act_dim) * 4 + padded_b * 4 + weight_bytes,
    )

    out = pl.pallas_call(
        _critic_kernel,
        out_shape=jax.ShapeDtypeStruct((1, padded_b), jnp.float32),
        grid_spec=pltpu.PrefetchScalarGridSpec(
            num_scalar_prefetch=0,
            grid=grid,
            in_specs=in_specs,
            out_specs=out_specs,
        ),
        compiler_params=pltpu.CompilerParams(
            dimension_semantics=("parallel",),
            vmem_limit_bytes=32 * 1024 * 1024,
        ),
        cost_estimate=cost,
    )(obs, acts, *weights)

    return out[0, :B].reshape(B, 1)


def init_critic_params(key, n_agent, dim_observation, dim_action):
    """Raw torch-layout parameters: weights (out, in), biases (out,)."""
    obs_dim = dim_observation * n_agent
    act_dim = dim_action * n_agent
    shapes = {
        "W1": (H1, obs_dim), "b1": (H1,),
        "W2": (H2, act_dim), "b2": (H2,),
        "W3": (H3, H1 + H2), "b3": (H3,),
        "W4": (H4, H3), "b4": (H4,),
        "W5": (1, H4), "b5": (1,),
    }
    fan_in = {"W1": obs_dim, "b1": obs_dim, "W2": act_dim, "b2": act_dim,
              "W3": H1 + H2, "b3": H1 + H2, "W4": H3, "b4": H3,
              "W5": H4, "b5": H4}
    params = {}
    keys = jax.random.split(key, len(shapes))
    for k, (name, shape) in zip(keys, shapes.items()):
        bound = 1.0 / math.sqrt(fan_in[name])
        params[name] = jax.random.uniform(k, shape, jnp.float32, -bound, bound)
    return params


def pack_critic_params(raw, compute_dtype=jnp.float32):
    """Pad FC1 196 -> 208 (sublane multiple), split FC3 across the [h1 | h2]
    boundary, and lay everything out (out, in) for the feature-major kernel.
    Biases of the first three stages follow compute_dtype (bf16 fast path);
    the FC4/FC5 tail stays f32."""
    obs_dim = raw["W1"].shape[1]
    act_dim = raw["W2"].shape[1]

    w1 = jnp.zeros((H1_PAD, obs_dim), jnp.float32).at[:H1].set(raw["W1"])
    b1 = jnp.zeros((H1_PAD, 1), jnp.float32).at[:H1, 0].set(raw["b1"])
    w3a = jnp.zeros((H3, H1_PAD), jnp.float32).at[:, :H1].set(raw["W3"][:, :H1])
    w3b = raw["W3"][:, H1:]                                   # (128, 128)

    return {
        "w1": w1.astype(compute_dtype),
        "b1": b1.astype(compute_dtype),
        "w2": raw["W2"].astype(compute_dtype),
        "b2": raw["b2"].reshape(H2, 1).astype(compute_dtype),
        "w3a": w3a.astype(compute_dtype),
        "w3b": w3b.astype(compute_dtype),
        "b3": raw["b3"].reshape(H3, 1).astype(compute_dtype),
        "w4": raw["W4"].astype(compute_dtype),
        "b4": raw["b4"].reshape(H4, 1),                       # f32 tail
        "w5": raw["W5"].T.astype(jnp.float32),                # (64, 1), VPU
        "b5": raw["b5"].reshape(1, 1),
    }


def critic_reference(obs, acts, raw):
    """Pure-JAX reference implementing exactly the torch forward (slope 0.2)."""
    lrelu = lambda t: jnp.where(t > 0, t, 0.2 * t)
    r = lrelu(obs @ raw["W1"].T + raw["b1"])
    a = lrelu(acts @ raw["W2"].T + raw["b2"])
    c = jnp.concatenate([r, a], axis=1)
    h = lrelu(c @ raw["W3"].T + raw["b3"])
    h = lrelu(h @ raw["W4"].T + raw["b4"])
    return h @ raw["W5"].T + raw["b5"]


if __name__ == "__main__":
    n_agent, dim_observation, dim_action = 3, 10, 2
    obs_dim = n_agent * dim_observation   # 30
    act_dim = n_agent * dim_action        # 6

    key = jax.random.PRNGKey(0)
    k_obs, k_act, k_par, k_obs2, k_act2 = jax.random.split(key, 5)
    raw = init_critic_params(k_par, n_agent, dim_observation, dim_action)

    # --- f32 path, multi-tile grid (384 rows -> 3 x 128-row tiles) ---
    B = 384
    obs = jax.random.normal(k_obs, (B, obs_dim), jnp.float32)
    acts = jax.random.normal(k_act, (B, act_dim), jnp.float32)
    packed = pack_critic_params(raw, jnp.float32)
    out = jax.block_until_ready(critic_forward(obs, acts, packed))
    ref = critic_reference(obs, acts, raw)
    assert out.shape == (B, 1)
    assert jnp.allclose(out, ref, atol=2e-4, rtol=2e-4), \
        float(jnp.max(jnp.abs(out - ref)))

    # --- ragged batch (exercises the pad-to-tile path, grid of 1) ---
    B2 = 50
    obs2 = jax.random.normal(k_obs2, (B2, obs_dim), jnp.float32)
    acts2 = jax.random.normal(k_act2, (B2, act_dim), jnp.float32)
    out2 = jax.block_until_ready(critic_forward(obs2, acts2, packed))
    ref2 = critic_reference(obs2, acts2, raw)
    assert out2.shape == (B2, 1)
    assert jnp.allclose(out2, ref2, atol=2e-4, rtol=2e-4), \
        float(jnp.max(jnp.abs(out2 - ref2)))

    # --- bf16 fast path: bf16 weights + bf16 elementwise on stages 1-3,
    #     f32 MXU accumulation, f32 FC4/FC5 tail ---
    packed_bf16 = pack_critic_params(raw, jnp.bfloat16)
    out_bf16 = jax.block_until_ready(critic_forward(obs, acts, packed_bf16))
    assert out_bf16.shape == (B, 1)
    assert jnp.allclose(out_bf16, ref, atol=0.1, rtol=0.1), \
        float(jnp.max(jnp.abs(out_bf16 - ref)))

    print("KERNEL_OK")
</pallas_src>

<mosaic_0001>
module attributes {stable_mosaic.version = 11 : i64} {
  func.func @_critic_kernel(%arg0: i32, %arg1: memref<128x30xf32, #tpu.memory_space<vmem>>, %arg2: memref<128x6xf32, #tpu.memory_space<vmem>>, %arg3: memref<208x30xf32, #tpu.memory_space<vmem>>, %arg4: memref<208x1xf32, #tpu.memory_space<vmem>>, %arg5: memref<128x6xf32, #tpu.memory_space<vmem>>, %arg6: memref<128x1xf32, #tpu.memory_space<vmem>>, %arg7: memref<128x208xf32, #tpu.memory_space<vmem>>, %arg8: memref<128x128xf32, #tpu.memory_space<vmem>>, %arg9: memref<128x1xf32, #tpu.memory_space<vmem>>, %arg10: memref<64x128xf32, #tpu.memory_space<vmem>>, %arg11: memref<64x1xf32, #tpu.memory_space<vmem>>, %arg12: memref<64x1xf32, #tpu.memory_space<vmem>>, %arg13: memref<1x1xf32, #tpu.memory_space<vmem>>, %arg14: memref<1x128xf32, #tpu.memory_space<vmem>>) attributes {dimension_semantics = [#tpu.dimension_semantics<parallel>], iteration_bounds = array<i64: 3>, scalar_prefetch = 0 : i64, scratch_operands = 0 : i64, tpu.core_type = #tpu.core_type<tc>, window_params = [{transform_indices = @transform_0, window_bounds = array<i64: 128, 30>}, {transform_indices = @transform_1, window_bounds = array<i64: 128, 6>}, {pipeline_mode = #tpu.pipeline_mode<synchronous>, transform_indices = @transform_2, window_bounds = array<i64: 208, 30>}, {pipeline_mode = #tpu.pipeline_mode<synchronous>, transform_indices = @transform_3, window_bounds = array<i64: 208, 1>}, {pipeline_mode = #tpu.pipeline_mode<synchronous>, transform_indices = @transform_4, window_bounds = array<i64: 128, 6>}, {pipeline_mode = #tpu.pipeline_mode<synchronous>, transform_indices = @transform_5, window_bounds = array<i64: 128, 1>}, {pipeline_mode = #tpu.pipeline_mode<synchronous>, transform_indices = @transform_6, window_bounds = array<i64: 128, 208>}, {pipeline_mode = #tpu.pipeline_mode<synchronous>, transform_indices = @transform_7, window_bounds = array<i64: 128, 128>}, {pipeline_mode = #tpu.pipeline_mode<synchronous>, transform_indices = @transform_8, window_bounds = array<i64: 128, 1>}, {pipeline_mode = #tpu.pipeline_mode<synchronous>, transform_indices = @transform_9, window_bounds = array<i64: 64, 128>}, {pipeline_mode = #tpu.pipeline_mode<synchronous>, transform_indices = @transform_10, window_bounds = array<i64: 64, 1>}, {pipeline_mode = #tpu.pipeline_mode<synchronous>, transform_indices = @transform_11, window_bounds = array<i64: 64, 1>}, {pipeline_mode = #tpu.pipeline_mode<synchronous>, transform_indices = @transform_12, window_bounds = array<i64: 1, 1>}, {transform_indices = @transform_13, window_bounds = array<i64: 1, 128>}]} {
    %c0 = arith.constant 0 : index
    %c0_0 = arith.constant 0 : index
    %0 = vector.load %arg1[%c0, %c0_0] : memref<128x30xf32, #tpu.memory_space<vmem>>, vector<128x30xf32>
    %c0_1 = arith.constant 0 : index
    %c0_2 = arith.constant 0 : index
    %1 = vector.load %arg2[%c0_1, %c0_2] : memref<128x6xf32, #tpu.memory_space<vmem>>, vector<128x6xf32>
    %c0_3 = arith.constant 0 : index
    %c0_4 = arith.constant 0 : index
    %2 = vector.load %arg3[%c0_3, %c0_4] : memref<208x30xf32, #tpu.memory_space<vmem>>, vector<208x30xf32>
    %cst = arith.constant dense<0.000000e+00> : vector<208x128xf32>
    %3 = tpu.matmul %2, %0, %cst {dimension_numbers = #tpu.dot_dimension_numbers<[1], [1], [0], [0], [0, 0, 1, 0], [], []>} : vector<208x30xf32>, vector<128x30xf32>, vector<208x128xf32> -> vector<208x128xf32>
    %c0_5 = arith.constant 0 : index
    %c0_6 = arith.constant 0 : index
    %4 = vector.load %arg5[%c0_5, %c0_6] : memref<128x6xf32, #tpu.memory_space<vmem>>, vector<128x6xf32>
    %cst_7 = arith.constant dense<0.000000e+00> : vector<128x128xf32>
    %5 = tpu.matmul %4, %1, %cst_7 {dimension_numbers = #tpu.dot_dimension_numbers<[1], [1], [0], [0], [0, 0, 1, 0], [], []>} : vector<128x6xf32>, vector<128x6xf32>, vector<128x128xf32> -> vector<128x128xf32>
    %c0_8 = arith.constant 0 : index
    %c0_9 = arith.constant 0 : index
    %6 = vector.load %arg4[%c0_8, %c0_9] : memref<208x1xf32, #tpu.memory_space<vmem>>, vector<208x1xf32>
    %7 = vector.broadcast %6 : vector<208x1xf32> to vector<208x128xf32>
    %8 = arith.addf %3, %7 : vector<208x128xf32>
    %cst_10 = arith.constant 2.000000e-01 : f32
    %9 = vector.broadcast %cst_10 : f32 to vector<208x128xf32>
    %10 = arith.mulf %9, %8 : vector<208x128xf32>
    %11 = arith.maximumf %8, %10 : vector<208x128xf32>
    %c0_11 = arith.constant 0 : index
    %c0_12 = arith.constant 0 : index
    %12 = vector.load %arg6[%c0_11, %c0_12] : memref<128x1xf32, #tpu.memory_space<vmem>>, vector<128x1xf32>
    %13 = vector.broadcast %12 : vector<128x1xf32> to vector<128x128xf32>
    %14 = arith.addf %5, %13 : vector<128x128xf32>
    %cst_13 = arith.constant 2.000000e-01 : f32
    %15 = vector.broadcast %cst_13 : f32 to vector<128x128xf32>
    %16 = arith.mulf %15, %14 : vector<128x128xf32>
    %17 = arith.maximumf %14, %16 : vector<128x128xf32>
    %c0_14 = arith.constant 0 : index
    %c0_15 = arith.constant 0 : index
    %18 = vector.load %arg7[%c0_14, %c0_15] : memref<128x208xf32, #tpu.memory_space<vmem>>, vector<128x208xf32>
    %cst_16 = arith.constant dense<0.000000e+00> : vector<128x128xf32>
    %19 = tpu.matmul %18, %11, %cst_16 {dimension_numbers = #tpu.dot_dimension_numbers<[1], [0], [0], [1], [0, 0, 1, 1], [], []>} : vector<128x208xf32>, vector<208x128xf32>, vector<128x128xf32> -> vector<128x128xf32>
    %c0_17 = arith.constant 0 : index
    %c0_18 = arith.constant 0 : index
    %20 = vector.load %arg8[%c0_17, %c0_18] : memref<128x128xf32, #tpu.memory_space<vmem>>, vector<128x128xf32>
    %cst_19 = arith.constant dense<0.000000e+00> : vector<128x128xf32>
    %21 = tpu.matmul %20, %17, %cst_19 {dimension_numbers = #tpu.dot_dimension_numbers<[1], [0], [0], [1], [0, 0, 1, 1], [], []>} : vector<128x128xf32>, vector<128x128xf32>, vector<128x128xf32> -> vector<128x128xf32>
    %22 = arith.addf %19, %21 : vector<128x128xf32>
    %c0_20 = arith.constant 0 : index
    %c0_21 = arith.constant 0 : index
    %23 = vector.load %arg9[%c0_20, %c0_21] : memref<128x1xf32, #tpu.memory_space<vmem>>, vector<128x1xf32>
    %24 = vector.broadcast %23 : vector<128x1xf32> to vector<128x128xf32>
    %25 = arith.addf %22, %24 : vector<128x128xf32>
    %cst_22 = arith.constant 2.000000e-01 : f32
    %26 = vector.broadcast %cst_22 : f32 to vector<128x128xf32>
    %27 = arith.mulf %26, %25 : vector<128x128xf32>
    %28 = arith.maximumf %25, %27 : vector<128x128xf32>
    %c0_23 = arith.constant 0 : index
    %c0_24 = arith.constant 0 : index
    %29 = vector.load %arg10[%c0_23, %c0_24] : memref<64x128xf32, #tpu.memory_space<vmem>>, vector<64x128xf32>
    %cst_25 = arith.constant dense<0.000000e+00> : vector<64x128xf32>
    %30 = tpu.matmul %29, %28, %cst_25 {dimension_numbers = #tpu.dot_dimension_numbers<[1], [0], [0], [1], [0, 0, 1, 1], [], []>} : vector<64x128xf32>, vector<128x128xf32>, vector<64x128xf32> -> vector<64x128xf32>
    %c0_26 = arith.constant 0 : index
    %c0_27 = arith.constant 0 : index
    %31 = vector.load %arg11[%c0_26, %c0_27] : memref<64x1xf32, #tpu.memory_space<vmem>>, vector<64x1xf32>
    %32 = vector.broadcast %31 : vector<64x1xf32> to vector<64x128xf32>
    %33 = arith.addf %30, %32 : vector<64x128xf32>
    %cst_28 = arith.constant 2.000000e-01 : f32
    %34 = vector.broadcast %cst_28 : f32 to vector<64x128xf32>
    %35 = arith.mulf %34, %33 : vector<64x128xf32>
    %36 = arith.maximumf %33, %35 : vector<64x128xf32>
    %c0_29 = arith.constant 0 : index
    %c0_30 = arith.constant 0 : index
    %37 = vector.load %arg12[%c0_29, %c0_30] : memref<64x1xf32, #tpu.memory_space<vmem>>, vector<64x1xf32>
    %38 = vector.broadcast %37 : vector<64x1xf32> to vector<64x128xf32>
    %39 = arith.mulf %36, %38 : vector<64x128xf32>
    %cst_31 = arith.constant dense<0.000000e+00> : vector<128xf32>
    %40 = vector.multi_reduction <add>, %39, %cst_31 [0] : vector<64x128xf32> to vector<128xf32>
    %41 = vector.shape_cast %40 : vector<128xf32> to vector<1x128xf32>
    %c0_32 = arith.constant 0 : index
    %c0_33 = arith.constant 0 : index
    %42 = vector.load %arg13[%c0_32, %c0_33] : memref<1x1xf32, #tpu.memory_space<vmem>>, vector<1x1xf32>
    %43 = vector.broadcast %42 : vector<1x1xf32> to vector<1x128xf32>
    %44 = arith.addf %41, %43 : vector<1x128xf32>
    %c0_34 = arith.constant 0 : index
    %c0_35 = arith.constant 0 : index
    %45 = vector.load %arg14[%c0_34, %c0_35] : memref<1x128xf32, #tpu.memory_space<vmem>>, vector<1x128xf32>
    tpu.vector_store %arg14[%c0_34, %c0_35], %44 {strides = array<i32>} : memref<1x128xf32, #tpu.memory_space<vmem>>, vector<1x128xf32>,
    return
  }
  func.func @transform_0(%arg0: i32) -> (i32, i32) {
    %c0_i32 = arith.constant 0 : i32
    %c0_i32_0 = arith.constant 0 : i32
    return %arg0, %c0_i32 : i32, i32
  }
  func.func @transform_1(%arg0: i32) -> (i32, i32) {
    %c0_i32 = arith.constant 0 : i32
    %c0_i32_0 = arith.constant 0 : i32
    return %arg0, %c0_i32 : i32, i32
  }
  func.func @transform_2(%arg0: i32) -> (i32, i32) {
    %c0_i32 = arith.constant 0 : i32
    %c0_i32_0 = arith.constant 0 : i32
    %c0_i32_1 = arith.constant 0 : i32
    return %c0_i32, %c0_i32_0 : i32, i32
  }
  func.func @transform_3(%arg0: i32) -> (i32, i32) {
    %c0_i32 = arith.constant 0 : i32
    %c0_i32_0 = arith.constant 0 : i32
    %c0_i32_1 = arith.constant 0 : i32
    return %c0_i32, %c0_i32_0 : i32, i32
  }
  func.func @transform_4(%arg0: i32) -> (i32, i32) {
    %c0_i32 = arith.constant 0 : i32
    %c0_i32_0 = arith.constant 0 : i32
    %c0_i32_1 = arith.constant 0 : i32
    return %c0_i32, %c0_i32_0 : i32, i32
  }
  func.func @transform_5(%arg0: i32) -> (i32, i32) {
    %c0_i32 = arith.constant 0 : i32
    %c0_i32_0 = arith.constant 0 : i32
    %c0_i32_1 = arith.constant 0 : i32
    return %c0_i32, %c0_i32_0 : i32, i32
  }
  func.func @transform_6(%arg0: i32) -> (i32, i32) {
    %c0_i32 = arith.constant 0 : i32
    %c0_i32_0 = arith.constant 0 : i32
    %c0_i32_1 = arith.constant 0 : i32
    return %c0_i32, %c0_i32_0 : i32, i32
  }
  func.func @transform_7(%arg0: i32) -> (i32, i32) {
    %c0_i32 = arith.constant 0 : i32
    %c0_i32_0 = arith.constant 0 : i32
    %c0_i32_1 = arith.constant 0 : i32
    return %c0_i32, %c0_i32_0 : i32, i32
  }
  func.func @transform_8(%arg0: i32) -> (i32, i32) {
    %c0_i32 = arith.constant 0 : i32
    %c0_i32_0 = arith.constant 0 : i32
    %c0_i32_1 = arith.constant 0 : i32
    return %c0_i32, %c0_i32_0 : i32, i32
  }
  func.func @transform_9(%arg0: i32) -> (i32, i32) {
    %c0_i32 = arith.constant 0 : i32
    %c0_i32_0 = arith.constant 0 : i32
    %c0_i32_1 = arith.constant 0 : i32
    return %c0_i32, %c0_i32_0 : i32, i32
  }
  func.func @transform_10(%arg0: i32) -> (i32, i32) {
    %c0_i32 = arith.constant 0 : i32
    %c0_i32_0 = arith.constant 0 : i32
    %c0_i32_1 = arith.constant 0 : i32
    return %c0_i32, %c0_i32_0 : i32, i32
  }
  func.func @transform_11(%arg0: i32) -> (i32, i32) {
    %c0_i32 = arith.constant 0 : i32
    %c0_i32_0 = arith.constant 0 : i32
    %c0_i32_1 = arith.constant 0 : i32
    return %c0_i32, %c0_i32_0 : i32, i32
  }
  func.func @transform_12(%arg0: i32) -> (i32, i32) {
    %c0_i32 = arith.constant 0 : i32
    %c0_i32_0 = arith.constant 0 : i32
    %c0_i32_1 = arith.constant 0 : i32
    return %c0_i32, %c0_i32_0 : i32, i32
  }
  func.func @transform_13(%arg0: i32) -> (i32, i32) {
    %c0_i32 = arith.constant 0 : i32
    %c0_i32_0 = arith.constant 0 : i32
    return %c0_i32, %arg0 : i32, i32
  }
}

</mosaic_0001>

<llo_original>
// kernel: tpu_custom_call.1
$region0: #{tpu_custom_call.1}
  #allocation0 [shape = 'u32[]', space=smem, size = 0x4, offset = 0x4, fixed_abs, tag = 'smem constant byte address 0x4 - core index']
  #allocation1 [shape = 'u32[144,128]{1,0:T(1,128)}', space=vmem, size = 0x12000, scoped, tag = 'internal scratch']
  #allocation2 [shape = 'f32[1,1]{1,0:T(1,128)S(1)}', space=vmem, size = 0x200, scoped, tag = 'scoped memory for tpu_custom_call.1']
  %s0 = inlined_call_operand.vmem [shape: f32[384,30], index: 0, kind: input, shape index: {}]
  %s1 = inlined_call_operand.vmem [shape: f32[384,6], index: 1, kind: input, shape index: {}]
  %s2 = inlined_call_operand.vmem [shape: f32[208,30], index: 2, kind: input, shape index: {}]
  %s3 = inlined_call_operand.vmem [shape: f32[208,1], index: 3, kind: input, shape index: {}]
  %s4 = inlined_call_operand.vmem [shape: f32[128,6], index: 4, kind: input, shape index: {}]
  %s5 = inlined_call_operand.vmem [shape: f32[128,1], index: 5, kind: input, shape index: {}]
  %s6 = inlined_call_operand.vmem [shape: f32[128,208], index: 6, kind: input, shape index: {}]
  %s7 = inlined_call_operand.vmem [shape: f32[128,128], index: 7, kind: input, shape index: {}]
  %s8 = inlined_call_operand.vmem [shape: f32[128,1], index: 8, kind: input, shape index: {}]
  %s9 = inlined_call_operand.vmem [shape: f32[64,128], index: 9, kind: input, shape index: {}]
  %s10 = inlined_call_operand.vmem [shape: f32[64,1], index: 10, kind: input, shape index: {}]
  %s11 = inlined_call_operand.vmem [shape: f32[64,1], index: 11, kind: input, shape index: {}]
  %s12 = inlined_call_operand.<no memory space> [shape: f32[1,1], index: 12, kind: input, shape index: {}]
  %s13 = inlined_call_operand.hbm [shape: f32[1,384], index: 13, kind: output, shape index: {}]
  %s14 = sld [smem:[#allocation0]]
  $region85: #{tpu_custom_call.1} parent=0
    _
  %s16 = ssub.s32 1, %s14
  %s17 = scalar_select 0, %s16, %s14
  %v18 = vstv %s12
  %19 = vst [vmem:[#allocation2] sm:$0x1] %v18
  $region1: #{tpu_custom_call.1} parent=0
    #allocation3 [shape = 'u8[1024]{0}', space=vmem, size = 0x400, scoped, tag = 'output window, operand 0']
    #allocation4 [shape = 's32[2]{0}', space=sflag, size = 0x8, scoped, tag = 'scoped memory for tpu_custom_call.1']
    %20 = vsyncpa [#allocation4], 0
    %s21 = scalar_lea.sflag [#allocation4], 1
    %22 = vsyncpa %s21, 0
    loop: start=0, step=1, limit=5
    $region2: #{tpu_custom_call.1} parent=1 // loop_pre_header
      _
    $region3: #{tpu_custom_call.1} parent=1 // loop_header
      %s24 = sphi 0, %s28
      %p25 = scmp.ge.s32.totalorder %s24, 5
      %s34 = sphi 0, %s36
      %s37 = sphi 0, %s34
      %s38 = sphi 0, %s37
      %s54 = sphi 0, %s38
      %s60 = sphi 0, %s62
      %s63 = sphi 0, %s60
      %s64 = sphi 0, %s63
      %s80 = sphi 0, %s64
      %s84 = sphi 0, %s84
      %s86 = sphi 0, %s84
      %s87 = sphi 0, %s86
      %s101 = sphi 0, %s87
      %s105 = sphi 0, %s105
      %s107 = sphi 0, %s105
      %s108 = sphi 0, %s107
      %s122 = sphi 0, %s108
      %s126 = sphi 0, %s126
      %s128 = sphi 0, %s126
      %s129 = sphi 0, %s128
      %s143 = sphi 0, %s129
      %s147 = sphi 0, %s147
      %s149 = sphi 0, %s147
      %s150 = sphi 0, %s149
      %s164 = sphi 0, %s150
      %s168 = sphi 0, %s168
      %s170 = sphi 0, %s168
      %s171 = sphi 0, %s170
      %s185 = sphi 0, %s171
      %s189 = sphi 0, %s189
      %s191 = sphi 0, %s189
      %s192 = sphi 0, %s191
      %s206 = sphi 0, %s192
      %s210 = sphi 0, %s210
      %s212 = sphi 0, %s210
      %s213 = sphi 0, %s212
      %s227 = sphi 0, %s213
      %s231 = sphi 0, %s231
      %s233 = sphi 0, %s231
      %s234 = sphi 0, %s233
      %s248 = sphi 0, %s234
      %s252 = sphi 0, %s252
      %s254 = sphi 0, %s252
      %s255 = sphi 0, %s254
      %s269 = sphi 0, %s255
      %s273 = sphi 0, %s273
      %s275 = sphi 0, %s273
      %s276 = sphi 0, %s275
      %s290 = sphi 0, %s276
      %s294 = sphi 0, %s294
      %s296 = sphi 0, %s294
      %s297 = sphi 0, %s296
      %s311 = sphi 0, %s297
      %s317 = sphi 0, %s319
      %s320 = sphi 0, %s317
      %s321 = sphi 0, %s320
      %s337 = sphi 0, %s321
    $region4: #{tpu_custom_call.1} parent=1 // loop_header_branch
      %27 = sbr.rel (%p25) target = $region8
    $region5: #{tpu_custom_call.1} parent=1 // loop_body
      %s29 = ssub.s32 %s24, 1
      %s30 = ssub.s32 %s24, 2
      %s31 = sadd.s32 %s24, 1
      %s32 = ssub.s32 %s24, %s31
      %p33 = scmp.eq.s32.totalorder %s32, 0
      %s35 = sadd.s32 %s34, 1
      %s36 = scalar_select %p33, %s34, %s35
      %p39 = pneg %p33
      %p40 = scmp.eq.s32.totalorder %s24, 2
      %p41 = por %p39, %p40
      %p42 = scmp.ne.s32.totalorder %s34, %s37
      %p43 = scmp.eq.s32.totalorder %s24, 0
      %p44 = por %p42, %p43
      %p45 = scmp.ne.s32.totalorder %s34, %s37
      %p46 = scmp.eq.s32.totalorder %s29, 2
      %p47 = por %p45, %p46
      %p48 = scmp.ne.s32.totalorder %s37, %s38
      %p49 = scmp.eq.s32.totalorder %s29, 0
      %p50 = por %p48, %p49
      %p51 = scmp.ne.s32.totalorder %s37, %s38
      %p52 = scmp.eq.s32.totalorder %s30, 2
      %p53 = por %p51, %p52
      %p55 = scmp.ne.s32.totalorder %s38, %s54
      %p56 = scmp.eq.s32.totalorder %s30, 0
      %p57 = por %p55, %p56
      %s58 = ssub.s32 %s24, %s31
      %p59 = scmp.eq.s32.totalorder %s58, 0
      %s61 = sadd.s32 %s60, 1
      %s62 = scalar_select %p59, %s60, %s61
      %p65 = pneg %p59
      %p66 = scmp.eq.s32.totalorder %s24, 2
      %p67 = por %p65, %p66
      %p68 = scmp.ne.s32.totalorder %s60, %s63
      %p69 = scmp.eq.s32.totalorder %s24, 0
      %p70 = por %p68, %p69
      %p71 = scmp.ne.s32.totalorder %s60, %s63
      %p72 = scmp.eq.s32.totalorder %s29, 2
      %p73 = por %p71, %p72
      %p74 = scmp.ne.s32.totalorder %s63, %s64
      %p75 = scmp.eq.s32.totalorder %s29, 0
      %p76 = por %p74, %p75
      %p77 = scmp.ne.s32.totalorder %s63, %s64
      %p78 = scmp.eq.s32.totalorder %s30, 2
      %p79 = por %p77, %p78
      %p81 = scmp.ne.s32.totalorder %s64, %s80
      %p82 = scmp.eq.s32.totalorder %s30, 0
      %p83 = por %p81, %p82
      %s85 = sadd.s32 %s84, 1
      %p88 = scmp.eq.s32.totalorder %s24, 2
      %p89 = scmp.ne.s32.totalorder %s84, %s86
      %p90 = scmp.eq.s32.totalorder %s24, 0
      %p91 = por %p89, %p90
      %p92 = scmp.ne.s32.totalorder %s84, %s86
      %p93 = scmp.eq.s32.totalorder %s29, 2
      %p94 = por %p92, %p93
      %p95 = scmp.ne.s32.totalorder %s86, %s87
      %p96 = scmp.eq.s32.totalorder %s29, 0
      %p97 = por %p95, %p96
      %p98 = scmp.ne.s32.totalorder %s86, %s87
      %p99 = scmp.eq.s32.totalorder %s30, 2
      %p100 = por %p98, %p99
      %p102 = scmp.ne.s32.totalorder %s87, %s101
      %p103 = scmp.eq.s32.totalorder %s30, 0
      %p104 = por %p102, %p103
      %s106 = sadd.s32 %s105, 1
      %p109 = scmp.eq.s32.totalorder %s24, 2
      %p110 = scmp.ne.s32.totalorder %s105, %s107
      %p111 = scmp.eq.s32.totalorder %s24, 0
      %p112 = por %p110, %p111
      %p113 = scmp.ne.s32.totalorder %s105, %s107
      %p114 = scmp.eq.s32.totalorder %s29, 2
      %p115 = por %p113, %p114
      %p116 = scmp.ne.s32.totalorder %s107, %s108
      %p117 = scmp.eq.s32.totalorder %s29, 0
      %p118 = por %p116, %p117
      %p119 = scmp.ne.s32.totalorder %s107, %s108
      %p120 = scmp.eq.s32.totalorder %s30, 2
      %p121 = por %p119, %p120
      %p123 = scmp.ne.s32.totalorder %s108, %s122
      %p124 = scmp.eq.s32.totalorder %s30, 0
      %p125 = por %p123, %p124
      %s127 = sadd.s32 %s126, 1
      %p130 = scmp.eq.s32.totalorder %s24, 2
      %p131 = scmp.ne.s32.totalorder %s126, %s128
      %p132 = scmp.eq.s32.totalorder %s24, 0
      %p133 = por %p131, %p132
      %p134 = scmp.ne.s32.totalorder %s126, %s128
      %p135 = scmp.eq.s32.totalorder %s29, 2
      %p136 = por %p134, %p135
      %p137 = scmp.ne.s32.totalorder %s128, %s129
      %p138 = scmp.eq.s32.totalorder %s29, 0
      %p139 = por %p137, %p138
      %p140 = scmp.ne.s32.totalorder %s128, %s129
      %p141 = scmp.eq.s32.totalorder %s30, 2
      %p142 = por %p140, %p141
      %p144 = scmp.ne.s32.totalorder %s129, %s143
      %p145 = scmp.eq.s32.totalorder %s30, 0
      %p146 = por %p144, %p145
      %s148 = sadd.s32 %s147, 1
      %p151 = scmp.eq.s32.totalorder %s24, 2
      %p152 = scmp.ne.s32.totalorder %s147, %s149
      %p153 = scmp.eq.s32.totalorder %s24, 0
      %p154 = por %p152, %p153
      %p155 = scmp.ne.s32.totalorder %s147, %s149
      %p156 = scmp.eq.s32.totalorder %s29, 2
      %p157 = por %p155, %p156
      %p158 = scmp.ne.s32.totalorder %s149, %s150
      %p159 = scmp.eq.s32.totalorder %s29, 0
      %p160 = por %p158, %p159
      %p161 = scmp.ne.s32.totalorder %s149, %s150
      %p162 = scmp.eq.s32.totalorder %s30, 2
      %p163 = por %p161, %p162
      %p165 = scmp.ne.s32.totalorder %s150, %s164
      %p166 = scmp.eq.s32.totalorder %s30, 0
      %p167 = por %p165, %p166
      %s169 = sadd.s32 %s168, 1
      %p172 = scmp.eq.s32.totalorder %s24, 2
      %p173 = scmp.ne.s32.totalorder %s168, %s170
      %p174 = scmp.eq.s32.totalorder %s24, 0
      %p175 = por %p173, %p174
      %p176 = scmp.ne.s32.totalorder %s168, %s170
      %p177 = scmp.eq.s32.totalorder %s29, 2
      %p178 = por %p176, %p177
      %p179 = scmp.ne.s32.totalorder %s170, %s171
      %p180 = scmp.eq.s32.totalorder %s29, 0
      %p181 = por %p179, %p180
      %p182 = scmp.ne.s32.totalorder %s170, %s171
      %p183 = scmp.eq.s32.totalorder %s30, 2
      %p184 = por %p182, %p183
      %p186 = scmp.ne.s32.totalorder %s171, %s185
      %p187 = scmp.eq.s32.totalorder %s30, 0
      %p188 = por %p186, %p187
      %s190 = sadd.s32 %s189, 1
      %p193 = scmp.eq.s32.totalorder %s24, 2
      %p194 = scmp.ne.s32.totalorder %s189, %s191
      %p195 = scmp.eq.s32.totalorder %s24, 0
      %p196 = por %p194, %p195
      %p197 = scmp.ne.s32.totalorder %s189, %s191
      %p198 = scmp.eq.s32.totalorder %s29, 2
      %p199 = por %p197, %p198
      %p200 = scmp.ne.s32.totalorder %s191, %s192
      %p201 = scmp.eq.s32.totalorder %s29, 0
      %p202 = por %p200, %p201
      %p203 = scmp.ne.s32.totalorder %s191, %s192
      %p204 = scmp.eq.s32.totalorder %s30, 2
      %p205 = por %p203, %p204
      %p207 = scmp.ne.s32.totalorder %s192, %s206
      %p208 = scmp.eq.s32.totalorder %s30, 0
      %p209 = por %p207, %p208
      %s211 = sadd.s32 %s210, 1
      %p214 = scmp.eq.s32.totalorder %s24, 2
      %p215 = scmp.ne.s32.totalorder %s210, %s212
      %p216 = scmp.eq.s32.totalorder %s24, 0
      %p217 = por %p215, %p216
      %p218 = scmp.ne.s32.totalorder %s210, %s212
      %p219 = scmp.eq.s32.totalorder %s29, 2
      %p220 = por %p218, %p219
      %p221 = scmp.ne.s32.totalorder %s212, %s213
      %p222 = scmp.eq.s32.totalorder %s29, 0
      %p223 = por %p221, %p222
      %p224 = scmp.ne.s32.totalorder %s212, %s213
      %p225 = scmp.eq.s32.totalorder %s30, 2
      %p226 = por %p224, %p225
      %p228 = scmp.ne.s32.totalorder %s213, %s227
      %p229 = scmp.eq.s32.totalorder %s30, 0
      %p230 = por %p228, %p229
      %s232 = sadd.s32 %s231, 1
      %p235 = scmp.eq.s32.totalorder %s24, 2
      %p236 = scmp.ne.s32.totalorder %s231, %s233
      %p237 = scmp.eq.s32.totalorder %s24, 0
      %p238 = por %p236, %p237
      %p239 = scmp.ne.s32.totalorder %s231, %s233
      %p240 = scmp.eq.s32.totalorder %s29, 2
      %p241 = por %p239, %p240
      %p242 = scmp.ne.s32.totalorder %s233, %s234
      %p243 = scmp.eq.s32.totalorder %s29, 0
      %p244 = por %p242, %p243
      %p245 = scmp.ne.s32.totalorder %s233, %s234
      %p246 = scmp.eq.s32.totalorder %s30, 2
      %p247 = por %p245, %p246
      %p249 = scmp.ne.s32.totalorder %s234, %s248
      %p250 = scmp.eq.s32.totalorder %s30, 0
      %p251 = por %p249, %p250
      %s253 = sadd.s32 %s252, 1
      %p256 = scmp.eq.s32.totalorder %s24, 2
      %p257 = scmp.ne.s32.totalorder %s252, %s254
      %p258 = scmp.eq.s32.totalorder %s24, 0
      %p259 = por %p257, %p258
      %p260 = scmp.ne.s32.totalorder %s252, %s254
      %p261 = scmp.eq.s32.totalorder %s29, 2
      %p262 = por %p260, %p261
      %p263 = scmp.ne.s32.totalorder %s254, %s255
      %p264 = scmp.eq.s32.totalorder %s29, 0
      %p265 = por %p263, %p264
      %p266 = scmp.ne.s32.totalorder %s254, %s255
      %p267 = scmp.eq.s32.totalorder %s30, 2
      %p268 = por %p266, %p267
      %p270 = scmp.ne.s32.totalorder %s255, %s269
      %p271 = scmp.eq.s32.totalorder %s30, 0
      %p272 = por %p270, %p271
      %s274 = sadd.s32 %s273, 1
      %p277 = scmp.eq.s32.totalorder %s24, 2
      %p278 = scmp.ne.s32.totalorder %s273, %s275
      %p279 = scmp.eq.s32.totalorder %s24, 0
      %p280 = por %p278, %p279
      %p281 = scmp.ne.s32.totalorder %s273, %s275
      %p282 = scmp.eq.s32.totalorder %s29, 2
      %p283 = por %p281, %p282
      %p284 = scmp.ne.s32.totalorder %s275, %s276
      %p285 = scmp.eq.s32.totalorder %s29, 0
      %p286 = por %p284, %p285
      %p287 = scmp.ne.s32.totalorder %s275, %s276
      %p288 = scmp.eq.s32.totalorder %s30, 2
      %p289 = por %p287, %p288
      %p291 = scmp.ne.s32.totalorder %s276, %s290
      %p292 = scmp.eq.s32.totalorder %s30, 0
      %p293 = por %p291, %p292
      %s295 = sadd.s32 %s294, 1
      %p298 = scmp.eq.s32.totalorder %s24, 2
      %p299 = scmp.ne.s32.totalorder %s294, %s296
      %p300 = scmp.eq.s32.totalorder %s24, 0
      %p301 = por %p299, %p300
      %p302 = scmp.ne.s32.totalorder %s294, %s296
      %p303 = scmp.eq.s32.totalorder %s29, 2
      %p304 = por %p302, %p303
      %p305 = scmp.ne.s32.totalorder %s296, %s297
      %p306 = scmp.eq.s32.totalorder %s29, 0
      %p307 = por %p305, %p306
      %p308 = scmp.ne.s32.totalorder %s296, %s297
      %p309 = scmp.eq.s32.totalorder %s30, 2
      %p310 = por %p308, %p309
      %p312 = scmp.ne.s32.totalorder %s297, %s311
      %p313 = scmp.eq.s32.totalorder %s30, 0
      %p314 = por %p312, %p313
      %s315 = ssub.s32 %s24, %s31
      %p316 = scmp.eq.s32.totalorder %s315, 0
      %s318 = sadd.s32 %s317, 1
      %s319 = scalar_select %p316, %s317, %s318
      %p322 = pneg %p316
      %p323 = scmp.eq.s32.totalorder %s24, 2
      %p324 = por %p322, %p323
      %p325 = scmp.ne.s32.totalorder %s317, %s320
      %p326 = scmp.eq.s32.totalorder %s24, 0
      %p327 = por %p325, %p326
      %p328 = scmp.ne.s32.totalorder %s317, %s320
      %p329 = scmp.eq.s32.totalorder %s29, 2
      %p330 = por %p328, %p329
      %p331 = scmp.ne.s32.totalorder %s320, %s321
      %p332 = scmp.eq.s32.totalorder %s29, 0
      %p333 = por %p331, %p332
      %p334 = scmp.ne.s32.totalorder %s320, %s321
      %p335 = scmp.eq.s32.totalorder %s30, 2
      %p336 = por %p334, %p335
      %p338 = scmp.ne.s32.totalorder %s321, %s337
      %p339 = scmp.eq.s32.totalorder %s30, 0
      %p340 = por %p338, %p339
      %p341 = scmp.le.s32.totalorder 1, %s24
      %p342 = scmp.lt.s32.totalorder %s24, 4
      %p343 = pnand %p341, %p342
      %p344 = pneg %p343
      // Predicated region
      $region9: #{tpu_custom_call.1} parent=5 // pred_check
        _
      $region10: #{tpu_custom_call.1} parent=5 // pred_check_branch
        %346 = sbr.rel (%p343) target = $region12
      $region11: #{tpu_custom_call.1} parent=5 // pred_region
        %s347 = ssub.s32 %s24, 1
        // Predicated region
        $region13: #{tpu_custom_call.1} parent=11 // pred_check
          %p348 = pneg %p97
        $region14: #{tpu_custom_call.1} parent=11 // pred_check_branch
          %350 = sbr.rel (%p348) target = $region16
        $region15: #{tpu_custom_call.1} parent=11 // pred_region
          _
        $region16: #{tpu_custom_call.1} parent=11 // pred_fallthru
          _
        // Predicated region
        $region17: #{tpu_custom_call.1} parent=11 // pred_check
          %p351 = pneg %p118
        $region18: #{tpu_custom_call.1} parent=11 // pred_check_branch
          %353 = sbr.rel (%p351) target = $region20
        $region19: #{tpu_custom_call.1} parent=11 // pred_region
          _
        $region20: #{tpu_custom_call.1} parent=11 // pred_fallthru
          _
        // Predicated region
        $region21: #{tpu_custom_call.1} parent=11 // pred_check
          %p354 = pneg %p139
        $region22: #{tpu_custom_call.1} parent=11 // pred_check_branch
          %356 = sbr.rel (%p354) target = $region24
        $region23: #{tpu_custom_call.1} parent=11 // pred_region
          _
        $region24: #{tpu_custom_call.1} parent=11 // pred_fallthru
          _
        // Predicated region
        $region25: #{tpu_custom_call.1} parent=11 // pred_check
          %p357 = pneg %p160
        $region26: #{tpu_custom_call.1} parent=11 // pred_check_branch
          %359 = sbr.rel (%p357) target = $region28
        $region27: #{tpu_custom_call.1} parent=11 // pred_region
          _
        $region28: #{tpu_custom_call.1} parent=11 // pred_fallthru
          _
        // Predicated region
        $region29: #{tpu_custom_call.1} parent=11 // pred_check
          %p360 = pneg %p181
        $region30: #{tpu_custom_call.1} parent=11 // pred_check_branch
          %362 = sbr.rel (%p360) target = $region32
        $region31: #{tpu_custom_call.1} parent=11 // pred_region
          _
        $region32: #{tpu_custom_call.1} parent=11 // pred_fallthru
          _
        // Predicated region
        $region33: #{tpu_custom_call.1} parent=11 // pred_check
          %p363 = pneg %p202
        $region34: #{tpu_custom_call.1} parent=11 // pred_check_branch
          %365 = sbr.rel (%p363) target = $region36
        $region35: #{tpu_custom_call.1} parent=11 // pred_region
          _
        $region36: #{tpu_custom_call.1} parent=11 // pred_fallthru
          _
        // Predicated region
        $region37: #{tpu_custom_call.1} parent=11 // pred_check
          %p366 = pneg %p223
        $region38: #{tpu_custom_call.1} parent=11 // pred_check_branch
          %368 = sbr.rel (%p366) target = $region40
        $region39: #{tpu_custom_call.1} parent=11 // pred_region
          _
        $region40: #{tpu_custom_call.1} parent=11 // pred_fallthru
          _
        // Predicated region
        $region41: #{tpu_custom_call.1} parent=11 // pred_check
          %p369 = pneg %p244
        $region42: #{tpu_custom_call.1} parent=11 // pred_check_branch
          %371 = sbr.rel (%p369) target = $region44
        $region43: #{tpu_custom_call.1} parent=11 // pred_region
          _
        $region44: #{tpu_custom_call.1} parent=11 // pred_fallthru
          _
        // Predicated region
        $region45: #{tpu_custom_call.1} parent=11 // pred_check
          %p372 = pneg %p265
        $region46: #{tpu_custom_call.1} parent=11 // pred_check_branch
          %374 = sbr.rel (%p372) target = $region48
        $region47: #{tpu_custom_call.1} parent=11 // pred_region
          _
        $region48: #{tpu_custom_call.1} parent=11 // pred_fallthru
          _
        // Predicated region
        $region49: #{tpu_custom_call.1} parent=11 // pred_check
          %p375 = pneg %p286
        $region50: #{tpu_custom_call.1} parent=11 // pred_check_branch
          %377 = sbr.rel (%p375) target = $region52
        $region51: #{tpu_custom_call.1} parent=11 // pred_region
          _
        $region52: #{tpu_custom_call.1} parent=11 // pred_fallthru
          _
        // Predicated region
        $region53: #{tpu_custom_call.1} parent=11 // pred_check
          %p378 = pneg %p307
        $region54: #{tpu_custom_call.1} parent=11 // pred_check_branch
          %380 = sbr.rel (%p378) target = $region56
        $region55: #{tpu_custom_call.1} parent=11 // pred_region
          _
        $region56: #{tpu_custom_call.1} parent=11 // pred_fallthru
          _
      $region12: #{tpu_custom_call.1} parent=5 // pred_fallthru
        _
      %p381 = scmp.lt.s32.totalorder %s24, 3
      // Predicated region
      $region57: #{tpu_custom_call.1} parent=5 // pred_check
        %p382 = pneg %p381
      $region58: #{tpu_custom_call.1} parent=5 // pred_check_branch
        %384 = sbr.rel (%p382) target = $region60
      $region59: #{tpu_custom_call.1} parent=5 // pred_region
        // Predicated region
        $region61: #{tpu_custom_call.1} parent=59 // pred_check
          %p385 = pneg %p44
        $region62: #{tpu_custom_call.1} parent=59 // pred_check_branch
          %387 = sbr.rel (%p385) target = $region64
        $region63: #{tpu_custom_call.1} parent=59 // pred_region
          %s388 = smul.u32 16, %s24
          %p389 = scmp.lt.s32.totalorder %s388, 47
          %s390 = scalar_select %p389, %s388, 47
          %s391 = smul.addr %s390, 8
          %s392 = scalar_lea.vmem %s0, %s391
          %s393 = smul.u32 16, %s24
        $region64: #{tpu_custom_call.1} parent=59 // pred_fallthru
          _
        // Predicated region
        $region65: #{tpu_custom_call.1} parent=59 // pred_check
          %p394 = pneg %p70
        $region66: #{tpu_custom_call.1} parent=59 // pred_check_branch
          %396 = sbr.rel (%p394) target = $region68
        $region67: #{tpu_custom_call.1} parent=59 // pred_region
          %s397 = smul.u32 16, %s24
          %p398 = scmp.lt.s32.totalorder %s397, 47
          %s399 = scalar_select %p398, %s397, 47
          %s400 = smul.addr %s399, 8
          %s401 = scalar_lea.vmem %s1, %s400
          %s402 = smul.u32 16, %s24
        $region68: #{tpu_custom_call.1} parent=59 // pred_fallthru
          _
      $region60: #{tpu_custom_call.1} parent=5 // pred_fallthru
        _
      %p403 = scmp.le.s32.totalorder 1, %s24
      %p404 = scmp.lt.s32.totalorder %s24, 4
      %p405 = pnand %p403, %p404
      %p406 = pneg %p405
      // Predicated region
      $region69: #{tpu_custom_call.1} parent=5 // pred_check
        _
      $region70: #{tpu_custom_call.1} parent=5 // pred_check_branch
        %408 = sbr.rel (%p405) target = $region72
      $region71: #{tpu_custom_call.1} parent=5 // pred_region
        %s409 = ssub.s32 %s24, 1
        %s410 = smul.u32 16, %s29
        %p411 = scmp.lt.s32.totalorder %s410, 47
        %s412 = scalar_select %p411, %s410, 47
        %s413 = smul.addr %s412, 8
        %s414 = scalar_lea.vmem %s0, %s413
        %p415 = pneg %p50
        %p416 = pneg %p47
        %s417 = smul.u32 16, %s29
        %p418 = scmp.lt.s32.totalorder %s417, 47
        %s419 = scalar_select %p418, %s417, 47
        %s420 = smul.addr %s419, 8
        %s421 = scalar_lea.vmem %s1, %s420
        %p422 = pneg %p76
        %p423 = pneg %p73
        %p424 = pneg %p97
        %p425 = pneg %p94
        %p426 = pneg %p118
        %p427 = pneg %p115
        %p428 = pneg %p139
        %p429 = pneg %p136
        %p430 = pneg %p160
        %p431 = pneg %p157
        %p432 = pneg %p181
        %p433 = pneg %p178
        %p434 = pneg %p202
        %p435 = pneg %p199
        %p436 = pneg %p223
        %p437 = pneg %p220
        %p438 = pneg %p244
        %p439 = pneg %p241
        %p440 = pneg %p265
        %p441 = pneg %p262
        %p442 = pneg %p286
        %p443 = pneg %p283
        %p444 = pneg %p307
        %p445 = pneg %p304
        %p446 = pneg %p333
        %p447 = pneg %p330
        %s448 = sand.u32 %s320, 1
        %s449 = scalar_lea.sflag [#allocation4], %s448
        %s450 = sand.u32 %s320, 1
        %s451 = scalar_lea.vmem [#allocation3], %s450
        %s452 = smul.u32 16, %s29
        %p453 = scmp.lt.s32.totalorder %s452, 47
        %s454 = scalar_select %p453, %s452, 47
        %s455 = smul.addr %s454, 8
        %s456 = scalar_lea.vmem %s0, %s455
        %s457 = smul.u32 16, %s29
        %s458 = smul.u32 16, %s29
        %p459 = scmp.lt.s32.totalorder %s458, 47
        %s460 = scalar_select %p459, %s458, 47
        %s461 = smul.addr %s460, 8
        %s462 = scalar_lea.vmem %s1, %s461
        %s463 = smul.u32 16, %s29
        %v464 = vld [vmem:[%s456] sm:$0xff]
        %v465 = vld [vmem:[%s456 + $0x8] sm:$0xff]
        %v466 = vld [vmem:[%s456 + $0x10] sm:$0xff]
        %v467 = vld [vmem:[%s456 + $0x18] sm:$0xff]
        %v468 = vld [vmem:[%s456 + $0x20] sm:$0xff]
        %v469 = vld [vmem:[%s456 + $0x28] sm:$0xff]
        %v470 = vld [vmem:[%s456 + $0x30] sm:$0xff]
        %v471 = vld [vmem:[%s456 + $0x38] sm:$0xff]
        %v472 = vld [vmem:[%s456 + $0x40] sm:$0xff]
        %v473 = vld [vmem:[%s456 + $0x48] sm:$0xff]
        %v474 = vld [vmem:[%s456 + $0x50] sm:$0xff]
        %v475 = vld [vmem:[%s456 + $0x58] sm:$0xff]
        %v476 = vld [vmem:[%s456 + $0x60] sm:$0xff]
        %v477 = vld [vmem:[%s456 + $0x68] sm:$0xff]
        %v478 = vld [vmem:[%s456 + $0x70] sm:$0xff]
        %v479 = vld [vmem:[%s456 + $0x78] sm:$0xff]
        %v480 = vld [vmem:[%s462] sm:$0xff]
        %v481 = vld [vmem:[%s462 + $0x8] sm:$0xff]
        %v482 = vld [vmem:[%s462 + $0x10] sm:$0xff]
        %v483 = vld [vmem:[%s462 + $0x18] sm:$0xff]
        %v484 = vld [vmem:[%s462 + $0x20] sm:$0xff]
        %v485 = vld [vmem:[%s462 + $0x28] sm:$0xff]
        %v486 = vld [vmem:[%s462 + $0x30] sm:$0xff]
        %v487 = vld [vmem:[%s462 + $0x38] sm:$0xff]
        %v488 = vld [vmem:[%s462 + $0x40] sm:$0xff]
        %v489 = vld [vmem:[%s462 + $0x48] sm:$0xff]
        %v490 = vld [vmem:[%s462 + $0x50] sm:$0xff]
        %v491 = vld [vmem:[%s462 + $0x58] sm:$0xff]
        %v492 = vld [vmem:[%s462 + $0x60] sm:$0xff]
        %v493 = vld [vmem:[%s462 + $0x68] sm:$0xff]
        %v494 = vld [vmem:[%s462 + $0x70] sm:$0xff]
        %v495 = vld [vmem:[%s462 + $0x78] sm:$0xff]
        %v496 = vld [vmem:[%s2] sm:$0xff]
        %v497 = vld [vmem:[%s2 + $0x8] sm:$0xff]
        %v498 = vld [vmem:[%s2 + $0x10] sm:$0xff]
        %v499 = vld [vmem:[%s2 + $0x18] sm:$0xff]
        %v500 = vld [vmem:[%s2 + $0x20] sm:$0xff]
        %v501 = vld [vmem:[%s2 + $0x28] sm:$0xff]
        %v502 = vld [vmem:[%s2 + $0x30] sm:$0xff]
        %v503 = vld [vmem:[%s2 + $0x38] sm:$0xff]
        %v504 = vld [vmem:[%s2 + $0x40] sm:$0xff]
        %v505 = vld [vmem:[%s2 + $0x48] sm:$0xff]
        %v506 = vld [vmem:[%s2 + $0x50] sm:$0xff]
        %v507 = vld [vmem:[%s2 + $0x58] sm:$0xff]
        %v508 = vld [vmem:[%s2 + $0x60] sm:$0xff]
        %v509 = vld [vmem:[%s2 + $0x68] sm:$0xff]
        %v510 = vld [vmem:[%s2 + $0x70] sm:$0xff]
        %v511 = vld [vmem:[%s2 + $0x78] sm:$0xff]
        %v512 = vld [vmem:[%s2 + $0x80] sm:$0xff]
        %v513 = vld [vmem:[%s2 + $0x88] sm:$0xff]
        %v514 = vld [vmem:[%s2 + $0x90] sm:$0xff]
        %v515 = vld [vmem:[%s2 + $0x98] sm:$0xff]
        %v516 = vld [vmem:[%s2 + $0xa0] sm:$0xff]
        %v517 = vld [vmem:[%s2 + $0xa8] sm:$0xff]
        %v518 = vld [vmem:[%s2 + $0xb0] sm:$0xff]
        %v519 = vld [vmem:[%s2 + $0xb8] sm:$0xff]
        %v520 = vld [vmem:[%s2 + $0xc0] sm:$0xff]
        %v521 = vld [vmem:[%s2 + $0xc8] sm:$0xff]
        %v522 = vld [vmem:[%s4] sm:$0xff]
        %v523 = vld [vmem:[%s4 + $0x8] sm:$0xff]
        %v524 = vld [vmem:[%s4 + $0x10] sm:$0xff]
        %v525 = vld [vmem:[%s4 + $0x18] sm:$0xff]
        %v526 = vld [vmem:[%s4 + $0x20] sm:$0xff]
        %v527 = vld [vmem:[%s4 + $0x28] sm:$0xff]
        %v528 = vld [vmem:[%s4 + $0x30] sm:$0xff]
        %v529 = vld [vmem:[%s4 + $0x38] sm:$0xff]
        %v530 = vld [vmem:[%s4 + $0x40] sm:$0xff]
        %v531 = vld [vmem:[%s4 + $0x48] sm:$0xff]
        %v532 = vld [vmem:[%s4 + $0x50] sm:$0xff]
        %v533 = vld [vmem:[%s4 + $0x58] sm:$0xff]
        %v534 = vld [vmem:[%s4 + $0x60] sm:$0xff]
        %v535 = vld [vmem:[%s4 + $0x68] sm:$0xff]
        %v536 = vld [vmem:[%s4 + $0x70] sm:$0xff]
        %v537 = vld [vmem:[%s4 + $0x78] sm:$0xff]
        %v538 = vld [vmem:[%s3] sm:$0xff]
        %v539 = vld [vmem:[%s3 + $0x8] sm:$0xff]
        %v540 = vld [vmem:[%s3 + $0x10] sm:$0xff]
        %v541 = vld [vmem:[%s3 + $0x18] sm:$0xff]
        %v542 = vld [vmem:[%s3 + $0x20] sm:$0xff]
        %v543 = vld [vmem:[%s3 + $0x28] sm:$0xff]
        %v544 = vld [vmem:[%s3 + $0x30] sm:$0xff]
        %v545 = vld [vmem:[%s3 + $0x38] sm:$0xff]
        %v546 = vld [vmem:[%s3 + $0x40] sm:$0xff]
        %v547 = vld [vmem:[%s3 + $0x48] sm:$0xff]
        %v548 = vld [vmem:[%s3 + $0x50] sm:$0xff]
        %v549 = vld [vmem:[%s3 + $0x58] sm:$0xff]
        %v550 = vld [vmem:[%s3 + $0x60] sm:$0xff]
        %v551 = vld [vmem:[%s3 + $0x68] sm:$0xff]
        %v552 = vld [vmem:[%s3 + $0x70] sm:$0xff]
        %v553 = vld [vmem:[%s3 + $0x78] sm:$0xff]
        %v554 = vld [vmem:[%s3 + $0x80] sm:$0xff]
        %v555 = vld [vmem:[%s3 + $0x88] sm:$0xff]
        %v556 = vld [vmem:[%s3 + $0x90] sm:$0xff]
        %v557 = vld [vmem:[%s3 + $0x98] sm:$0xff]
        %v558 = vld [vmem:[%s3 + $0xa0] sm:$0xff]
        %v559 = vld [vmem:[%s3 + $0xa8] sm:$0xff]
        %v560 = vld [vmem:[%s3 + $0xb0] sm:$0xff]
        %v561 = vld [vmem:[%s3 + $0xb8] sm:$0xff]
        %v562 = vld [vmem:[%s3 + $0xc0] sm:$0xff]
        %v563 = vld [vmem:[%s3 + $0xc8] sm:$0xff]
        %565 = vset.pattern.permute.xlu0 0
        %566 = vperm.xlu0 %565, %v538
        %v567 = vpop.permute.xlu0 %566
        %570 = vset.pattern.permute.xlu0 0
        %571 = vperm.xlu0 %570, %v539
        %v572 = vpop.permute.xlu0 %571
        %575 = vset.pattern.permute.xlu0 0
        %576 = vperm.xlu0 %575, %v540
        %v577 = vpop.permute.xlu0 %576
        %580 = vset.pattern.permute.xlu0 0
        %581 = vperm.xlu0 %580, %v541
        %v582 = vpop.permute.xlu0 %581
        %585 = vset.pattern.permute.xlu0 0
        %586 = vperm.xlu0 %585, %v542
        %v587 = vpop.permute.xlu0 %586
        %590 = vset.pattern.permute.xlu0 0
        %591 = vperm.xlu0 %590, %v543
        %v592 = vpop.permute.xlu0 %591
        %595 = vset.pattern.permute.xlu0 0
        %596 = vperm.xlu0 %595, %v544
        %v597 = vpop.permute.xlu0 %596
        %600 = vset.pattern.permute.xlu0 0
        %601 = vperm.xlu0 %600, %v545
        %v602 = vpop.permute.xlu0 %601
        %605 = vset.pattern.permute.xlu0 0
        %606 = vperm.xlu0 %605, %v546
        %v607 = vpop.permute.xlu0 %606
        %610 = vset.pattern.permute.xlu0 0
        %611 = vperm.xlu0 %610, %v547
        %v612 = vpop.permute.xlu0 %611
        %615 = vset.pattern.permute.xlu0 0
        %616 = vperm.xlu0 %615, %v548
        %v617 = vpop.permute.xlu0 %616
        %620 = vset.pattern.permute.xlu0 0
        %621 = vperm.xlu0 %620, %v549
        %v622 = vpop.permute.xlu0 %621
        %625 = vset.pattern.permute.xlu0 0
        %626 = vperm.xlu0 %625, %v550
        %v627 = vpop.permute.xlu0 %626
        %630 = vset.pattern.permute.xlu0 0
        %631 = vperm.xlu0 %630, %v551
        %v632 = vpop.permute.xlu0 %631
        %635 = vset.pattern.permute.xlu0 0
        %636 = vperm.xlu0 %635, %v552
        %v637 = vpop.permute.xlu0 %636
        %640 = vset.pattern.permute.xlu0 0
        %641 = vperm.xlu0 %640, %v553
        %v642 = vpop.permute.xlu0 %641
        %645 = vset.pattern.permute.xlu0 0
        %646 = vperm.xlu0 %645, %v554
        %v647 = vpop.permute.xlu0 %646
        %650 = vset.pattern.permute.xlu0 0
        %651 = vperm.xlu0 %650, %v555
        %v652 = vpop.permute.xlu0 %651
        %655 = vset.pattern.permute.xlu0 0
        %656 = vperm.xlu0 %655, %v556
        %v657 = vpop.permute.xlu0 %656
        %660 = vset.pattern.permute.xlu0 0
        %661 = vperm.xlu0 %660, %v557
        %v662 = vpop.permute.xlu0 %661
        %665 = vset.pattern.permute.xlu0 0
        %666 = vperm.xlu0 %665, %v558
        %v667 = vpop.permute.xlu0 %666
        %670 = vset.pattern.permute.xlu0 0
        %671 = vperm.xlu0 %670, %v559
        %v672 = vpop.permute.xlu0 %671
        %675 = vset.pattern.permute.xlu0 0
        %676 = vperm.xlu0 %675, %v560
        %v677 = vpop.permute.xlu0 %676
        %680 = vset.pattern.permute.xlu0 0
        %681 = vperm.xlu0 %680, %v561
        %v682 = vpop.permute.xlu0 %681
        %685 = vset.pattern.permute.xlu0 0
        %686 = vperm.xlu0 %685, %v562
        %v687 = vpop.permute.xlu0 %686
        %690 = vset.pattern.permute.xlu0 0
        %691 = vperm.xlu0 %690, %v563
        %v692 = vpop.permute.xlu0 %691
        %vm694 = vcmask 244736
        %v696 = vsel %vm694, %v496, 0
        %v699 = vsel %vm694, %v497, 0
        %v702 = vsel %vm694, %v498, 0
        %v705 = vsel %vm694, %v499, 0
        %v708 = vsel %vm694, %v500, 0
        %v711 = vsel %vm694, %v501, 0
        %v714 = vsel %vm694, %v502, 0
        %v717 = vsel %vm694, %v503, 0
        %v720 = vsel %vm694, %v504, 0
        %v723 = vsel %vm694, %v505, 0
        %v726 = vsel %vm694, %v506, 0
        %v729 = vsel %vm694, %v507, 0
        %v732 = vsel %vm694, %v508, 0
        %v735 = vsel %vm694, %v509, 0
        %v738 = vsel %vm694, %v510, 0
        %v741 = vsel %vm694, %v511, 0
        %v744 = vsel %vm694, %v512, 0
        %v747 = vsel %vm694, %v513, 0
        %v750 = vsel %vm694, %v514, 0
        %v753 = vsel %vm694, %v515, 0
        %v756 = vsel %vm694, %v516, 0
        %v759 = vsel %vm694, %v517, 0
        %v762 = vsel %vm694, %v518, 0
        %v765 = vsel %vm694, %v519, 0
        %v768 = vsel %vm694, %v520, 0
        %v771 = vsel %vm694, %v521, 0
        %v774 = vsel %vm694, %v464, 0
        %v777 = vsel %vm694, %v465, 0
        %v780 = vsel %vm694, %v466, 0
        %v783 = vsel %vm694, %v467, 0
        %v786 = vsel %vm694, %v468, 0
        %v789 = vsel %vm694, %v469, 0
        %v792 = vsel %vm694, %v470, 0
        %v795 = vsel %vm694, %v471, 0
        %v798 = vsel %vm694, %v472, 0
        %v801 = vsel %vm694, %v473, 0
        %v804 = vsel %vm694, %v474, 0
        %v807 = vsel %vm694, %v475, 0
        %v810 = vsel %vm694, %v476, 0
        %v813 = vsel %vm694, %v477, 0
        %v816 = vsel %vm694, %v478, 0
        %v819 = vsel %vm694, %v479, 0
        %821 = vmatprep.subr.mxu0 0.0
        %822 = vmatpush1.xpose.msra.mxu0 %v774
        %823 = vmatprep.subr.mxu0 0.0
        %824 = vmatpush1.xpose.msra.mxu0 %v777
        %825 = vmatprep.subr.mxu0 0.0
        %826 = vmatpush1.xpose.msra.mxu0 %v780
        %827 = vmatprep.subr.mxu0 0.0
        %828 = vmatpush1.xpose.msra.mxu0 %v783
        %829 = vmatprep.subr.mxu0 0.0
        %830 = vmatpush1.xpose.msra.mxu0 %v786
        %831 = vmatprep.subr.mxu0 0.0
        %832 = vmatpush1.xpose.msra.mxu0 %v789
        %833 = vmatprep.subr.mxu0 0.0
        %834 = vmatpush1.xpose.msra.mxu0 %v792
        %835 = vmatprep.subr.mxu0 0.0
        %836 = vmatpush1.xpose.msra.mxu0 %v795
        %837 = vmatprep.subr.mxu0 0.0
        %838 = vmatpush1.xpose.msra.mxu0 %v798
        %839 = vmatprep.subr.mxu0 0.0
        %840 = vmatpush1.xpose.msra.mxu0 %v801
        %841 = vmatprep.subr.mxu0 0.0
        %842 = vmatpush1.xpose.msra.mxu0 %v804
        %843 = vmatprep.subr.mxu0 0.0
        %844 = vmatpush1.xpose.msra.mxu0 %v807
        %845 = vmatprep.subr.mxu0 0.0
        %846 = vmatpush1.xpose.msra.mxu0 %v810
        %847 = vmatprep.subr.mxu0 0.0
        %848 = vmatpush1.xpose.msra.mxu0 %v813
        %849 = vmatprep.subr.mxu0 0.0
        %850 = vmatpush1.xpose.msra.mxu0 %v816
        %851 = vmatprep.subr.mxu0 0.0
        %852 = vmatpush1.xpose.msra.mxu0 %v819
        %853 = vmatprep.subr.mxu0 0.0
        %854 = vmatpush1.xpose.msra.mxu0 0.0
        %855 = vmatprep.subr.mxu0 0.0
        %856 = vmatpush1.xpose.msra.mxu0 0.0
        %857 = vmatprep.subr.mxu0 0.0
        %858 = vmatpush1.xpose.msra.mxu0 0.0
        %859 = vmatprep.subr.mxu0 0.0
        %860 = vmatpush1.xpose.msra.mxu0 0.0
        %861 = vmatprep.subr.mxu0 0.0
        %862 = vmatpush1.xpose.msra.mxu0 0.0
        %863 = vmatprep.subr.mxu0 0.0
        %864 = vmatpush1.xpose.msra.mxu0 0.0
        %865 = vmatprep.subr.mxu0 0.0
        %866 = vmatpush1.xpose.msra.mxu0 0.0
        %867 = vmatprep.subr.mxu0 0.0
        %868 = vmatpush1.xpose.msra.mxu0 0.0
        %869 = vmatprep.subr.mxu0 0.0
        %870 = vmatpush1.xpose.msra.mxu0 0.0
        %871 = vmatprep.subr.mxu0 0.0
        %872 = vmatpush1.xpose.msra.mxu0 0.0
        %873 = vmatprep.subr.mxu0 0.0
        %874 = vmatpush1.xpose.msra.mxu0 0.0
        %875 = vmatprep.subr.mxu0 0.0
        %876 = vmatpush1.xpose.msra.mxu0 0.0
        %877 = vmatprep.subr.mxu0 0.0
        %878 = vmatpush1.xpose.msra.mxu0 0.0
        %879 = vmatprep.subr.mxu0 0.0
        %880 = vmatpush1.xpose.msra.mxu0 0.0
        %881 = vmatprep.subr.mxu0 0.0
        %882 = vmatpush1.xpose.msra.mxu0 0.0
        %883 = vmatprep.subr.mxu0 0.0
        %884 = vmatpush1.xpose.msra.mxu0 0.0
        %885 = vmatprep.mubr.f32.mxu0 0.0
        %886 = vmatmul.mubr.f32.gmra.mrb[0].mxu0 %v696
        %v887 = vpop.f32.mrb[0].mxu0
        %v888 = vadd.f32 %v567, %v887
        %v889 = vpop.f32.mrb[0].mxu0
        %890 = vmatprep.mubr.f32.mxu0 0.0
        %891 = vmatmul.mubr.f32.gmra.mrb[0].mxu0 %v699
        %v892 = vpop.f32.mrb[0].mxu0
        %v893 = vadd.f32 %v572, %v892
        %v894 = vpop.f32.mrb[0].mxu0
        %895 = vmatprep.mubr.f32.mxu0 0.0
        %896 = vmatmul.mubr.f32.gmra.mrb[0].mxu0 %v702
        %v897 = vpop.f32.mrb[0].mxu0
        %v898 = vadd.f32 %v577, %v897
        %v899 = vpop.f32.mrb[0].mxu0
        %900 = vmatprep.mubr.f32.mxu0 0.0
        %901 = vmatmul.mubr.f32.gmra.mrb[0].mxu0 %v705
        %v902 = vpop.f32.mrb[0].mxu0
        %v903 = vadd.f32 %v582, %v902
        %v904 = vpop.f32.mrb[0].mxu0
        %905 = vmatprep.mubr.f32.mxu0 0.0
        %906 = vmatmul.mubr.f32.gmra.mrb[0].mxu0 %v708
        %v907 = vpop.f32.mrb[0].mxu0
        %v908 = vadd.f32 %v587, %v907
        %v909 = vpop.f32.mrb[0].mxu0
        %910 = vmatprep.mubr.f32.mxu0 0.0
        %911 = vmatmul.mubr.f32.gmra.mrb[0].mxu0 %v711
        %v912 = vpop.f32.mrb[0].mxu0
        %v913 = vadd.f32 %v592, %v912
        %v914 = vpop.f32.mrb[0].mxu0
        %915 = vmatprep.mubr.f32.mxu0 0.0
        %916 = vmatmul.mubr.f32.gmra.mrb[0].mxu0 %v714
        %v917 = vpop.f32.mrb[0].mxu0
        %v918 = vadd.f32 %v597, %v917
        %v919 = vpop.f32.mrb[0].mxu0
        %920 = vmatprep.mubr.f32.mxu0 0.0
        %921 = vmatmul.mubr.f32.gmra.mrb[0].mxu0 %v717
        %v922 = vpop.f32.mrb[0].mxu0
        %v923 = vadd.f32 %v602, %v922
        %v924 = vpop.f32.mrb[0].mxu0
        %925 = vmatprep.mubr.f32.mxu0 0.0
        %926 = vmatmul.mubr.f32.gmra.mrb[0].mxu0 %v720
        %v927 = vpop.f32.mrb[0].mxu0
        %v928 = vadd.f32 %v607, %v927
        %v929 = vpop.f32.mrb[0].mxu0
        %930 = vmatprep.mubr.f32.mxu0 0.0
        %931 = vmatmul.mubr.f32.gmra.mrb[0].mxu0 %v723
        %v932 = vpop.f32.mrb[0].mxu0
        %v933 = vadd.f32 %v612, %v932
        %v934 = vpop.f32.mrb[0].mxu0
        %935 = vmatprep.mubr.f32.mxu0 0.0
        %936 = vmatmul.mubr.f32.gmra.mrb[0].mxu0 %v726
        %v937 = vpop.f32.mrb[0].mxu0
        %v938 = vadd.f32 %v617, %v937
        %v939 = vpop.f32.mrb[0].mxu0
        %940 = vmatprep.mubr.f32.mxu0 0.0
        %941 = vmatmul.mubr.f32.gmra.mrb[0].mxu0 %v729
        %v942 = vpop.f32.mrb[0].mxu0
        %v943 = vadd.f32 %v622, %v942
        %v944 = vpop.f32.mrb[0].mxu0
        %945 = vmatprep.mubr.f32.mxu0 0.0
        %946 = vmatmul.mubr.f32.gmra.mrb[0].mxu0 %v732
        %v947 = vpop.f32.mrb[0].mxu0
        %v948 = vadd.f32 %v627, %v947
        %v949 = vpop.f32.mrb[0].mxu0
        %950 = vmatprep.mubr.f32.mxu0 0.0
        %951 = vmatmul.mubr.f32.gmra.mrb[0].mxu0 %v735
        %v952 = vpop.f32.mrb[0].mxu0
        %v953 = vadd.f32 %v632, %v952
        %v954 = vpop.f32.mrb[0].mxu0
        %955 = vmatprep.mubr.f32.mxu0 0.0
        %956 = vmatmul.mubr.f32.gmra.mrb[0].mxu0 %v738
        %v957 = vpop.f32.mrb[0].mxu0
        %v958 = vadd.f32 %v637, %v957
        %v959 = vpop.f32.mrb[0].mxu0
        %960 = vmatprep.mubr.f32.mxu0 0.0
        %961 = vmatmul.mubr.f32.gmra.mrb[0].mxu0 %v741
        %v962 = vpop.f32.mrb[0].mxu0
        %v963 = vadd.f32 %v642, %v962
        %v964 = vpop.f32.mrb[0].mxu0
        %965 = vmatprep.mubr.f32.mxu0 0.0
        %966 = vmatmul.mubr.f32.gmra.mrb[0].mxu0 %v744
        %v967 = vpop.f32.mrb[0].mxu0
        %v968 = vadd.f32 %v647, %v967
        %v969 = vpop.f32.mrb[0].mxu0
        %970 = vmatprep.mubr.f32.mxu0 0.0
        %971 = vmatmul.mubr.f32.gmra.mrb[0].mxu0 %v747
        %v972 = vpop.f32.mrb[0].mxu0
        %v973 = vadd.f32 %v652, %v972
        %v974 = vpop.f32.mrb[0].mxu0
        %975 = vmatprep.mubr.f32.mxu0 0.0
        %976 = vmatmul.mubr.f32.gmra.mrb[0].mxu0 %v750
        %v977 = vpop.f32.mrb[0].mxu0
        %v978 = vadd.f32 %v657, %v977
        %v979 = vpop.f32.mrb[0].mxu0
        %980 = vmatprep.mubr.f32.mxu0 0.0
        %981 = vmatmul.mubr.f32.gmra.mrb[0].mxu0 %v753
        %v982 = vpop.f32.mrb[0].mxu0
        %v983 = vadd.f32 %v662, %v982
        %v984 = vpop.f32.mrb[0].mxu0
        %985 = vmatprep.mubr.f32.mxu0 0.0
        %986 = vmatmul.mubr.f32.gmra.mrb[0].mxu0 %v756
        %v987 = vpop.f32.mrb[0].mxu0
        %v988 = vadd.f32 %v667, %v987
        %v989 = vpop.f32.mrb[0].mxu0
        %990 = vmatprep.mubr.f32.mxu0 0.0
        %991 = vmatmul.mubr.f32.gmra.mrb[0].mxu0 %v759
        %v992 = vpop.f32.mrb[0].mxu0
        %v993 = vadd.f32 %v672, %v992
        %v994 = vpop.f32.mrb[0].mxu0
        %995 = vmatprep.mubr.f32.mxu0 0.0
        %996 = vmatmul.mubr.f32.gmra.mrb[0].mxu0 %v762
        %v997 = vpop.f32.mrb[0].mxu0
        %v998 = vadd.f32 %v677, %v997
        %v999 = vpop.f32.mrb[0].mxu0
        %1000 = vmatprep.mubr.f32.mxu0 0.0
        %1001 = vmatmul.mubr.f32.gmra.mrb[0].mxu0 %v765
        %v1002 = vpop.f32.mrb[0].mxu0
        %v1003 = vadd.f32 %v682, %v1002
        %v1004 = vpop.f32.mrb[0].mxu0
        %1005 = vmatprep.mubr.f32.mxu0 0.0
        %1006 = vmatmul.mubr.f32.gmra.mrb[0].mxu0 %v768
        %v1007 = vpop.f32.mrb[0].mxu0
        %v1008 = vadd.f32 %v687, %v1007
        %v1009 = vpop.f32.mrb[0].mxu0
        %1010 = vmatprep.mubr.f32.mxu0 0.0
        %1011 = vmatmul.mubr.f32.gmra.mrb[0].mxu0 %v771
        %v1012 = vpop.f32.mrb[0].mxu0
        %v1013 = vadd.f32 %v692, %v1012
        %v1014 = vpop.f32.mrb[0].mxu0
        %1015 = vdwg.mxu0
        %v1016 = vmul.f32 %v888, 0.2
        %v1017 = vmul.f32 %v893, 0.2
        %v1018 = vmul.f32 %v898, 0.2
        %v1019 = vmul.f32 %v903, 0.2
        %v1020 = vmul.f32 %v908, 0.2
        %v1021 = vmul.f32 %v913, 0.2
        %v1022 = vmul.f32 %v918, 0.2
        %v1023 = vmul.f32 %v923, 0.2
        %v1024 = vmul.f32 %v928, 0.2
        %v1025 = vmul.f32 %v933, 0.2
        %v1026 = vmul.f32 %v938, 0.2
        %v1027 = vmul.f32 %v943, 0.2
        %v1028 = vmul.f32 %v948, 0.2
        %v1029 = vmul.f32 %v953, 0.2
        %v1030 = vmul.f32 %v958, 0.2
        %v1031 = vmul.f32 %v963, 0.2
        %v1032 = vmul.f32 %v968, 0.2
        %v1033 = vmul.f32 %v973, 0.2
        %v1034 = vmul.f32 %v978, 0.2
        %v1035 = vmul.f32 %v983, 0.2
        %v1036 = vmul.f32 %v988, 0.2
        %v1037 = vmul.f32 %v993, 0.2
        %v1038 = vmul.f32 %v998, 0.2
        %v1039 = vmul.f32 %v1003, 0.2
        %v1040 = vmul.f32 %v1008, 0.2
        %v1041 = vmul.f32 %v1013, 0.2
        %v1042 = vmax.f32 %v888, %v1016
        %v1043 = vmax.f32 %v893, %v1017
        %v1044 = vmax.f32 %v898, %v1018
        %v1045 = vmax.f32 %v903, %v1019
        %v1046 = vmax.f32 %v908, %v1020
        %v1047 = vmax.f32 %v913, %v1021
        %v1048 = vmax.f32 %v918, %v1022
        %v1049 = vmax.f32 %v923, %v1023
        %v1050 = vmax.f32 %v928, %v1024
        %v1051 = vmax.f32 %v933, %v1025
        %v1052 = vmax.f32 %v938, %v1026
        %v1053 = vmax.f32 %v943, %v1027
        %v1054 = vmax.f32 %v948, %v1028
        %v1055 = vmax.f32 %v953, %v1029
        %v1056 = vmax.f32 %v958, %v1030
        %v1057 = vmax.f32 %v963, %v1031
        %v1058 = vmax.f32 %v968, %v1032
        %v1059 = vmax.f32 %v973, %v1033
        %v1060 = vmax.f32 %v978, %v1034
        %v1061 = vmax.f32 %v983, %v1035
        %v1062 = vmax.f32 %v988, %v1036
        %v1063 = vmax.f32 %v993, %v1037
        %v1064 = vmax.f32 %v998, %v1038
        %v1065 = vmax.f32 %v1003, %v1039
        %v1066 = vmax.f32 %v1008, %v1040
        %v1067 = vmax.f32 %v1013, %v1041
        %v1068 = vld [vmem:[%s5] sm:$0xff]
        %v1069 = vld [vmem:[%s5 + $0x8] sm:$0xff]
        %v1070 = vld [vmem:[%s5 + $0x10] sm:$0xff]
        %v1071 = vld [vmem:[%s5 + $0x18] sm:$0xff]
        %v1072 = vld [vmem:[%s5 + $0x20] sm:$0xff]
        %v1073 = vld [vmem:[%s5 + $0x28] sm:$0xff]
        %v1074 = vld [vmem:[%s5 + $0x30] sm:$0xff]
        %v1075 = vld [vmem:[%s5 + $0x38] sm:$0xff]
        %v1076 = vld [vmem:[%s5 + $0x40] sm:$0xff]
        %v1077 = vld [vmem:[%s5 + $0x48] sm:$0xff]
        %v1078 = vld [vmem:[%s5 + $0x50] sm:$0xff]
        %v1079 = vld [vmem:[%s5 + $0x58] sm:$0xff]
        %v1080 = vld [vmem:[%s5 + $0x60] sm:$0xff]
        %v1081 = vld [vmem:[%s5 + $0x68] sm:$0xff]
        %v1082 = vld [vmem:[%s5 + $0x70] sm:$0xff]
        %v1083 = vld [vmem:[%s5 + $0x78] sm:$0xff]
        %1085 = vset.pattern.permute.xlu0 0
        %1086 = vperm.xlu0 %1085, %v1068
        %v1087 = vpop.permute.xlu0 %1086
        %1090 = vset.pattern.permute.xlu0 0
        %1091 = vperm.xlu0 %1090, %v1069
        %v1092 = vpop.permute.xlu0 %1091
        %1095 = vset.pattern.permute.xlu0 0
        %1096 = vperm.xlu0 %1095, %v1070
        %v1097 = vpop.permute.xlu0 %1096
        %1100 = vset.pattern.permute.xlu0 0
        %1101 = vperm.xlu0 %1100, %v1071
        %v1102 = vpop.permute.xlu0 %1101
        %1105 = vset.pattern.permute.xlu0 0
        %1106 = vperm.xlu0 %1105, %v1072
        %v1107 = vpop.permute.xlu0 %1106
        %1110 = vset.pattern.permute.xlu0 0
        %1111 = vperm.xlu0 %1110, %v1073
        %v1112 = vpop.permute.xlu0 %1111
        %1115 = vset.pattern.permute.xlu0 0
        %1116 = vperm.xlu0 %1115, %v1074
        %v1117 = vpop.permute.xlu0 %1116
        %1120 = vset.pattern.permute.xlu0 0
        %1121 = vperm.xlu0 %1120, %v1075
        %v1122 = vpop.permute.xlu0 %1121
        %1125 = vset.pattern.permute.xlu0 0
        %1126 = vperm.xlu0 %1125, %v1076
        %v1127 = vpop.permute.xlu0 %1126
        %1130 = vset.pattern.permute.xlu0 0
        %1131 = vperm.xlu0 %1130, %v1077
        %v1132 = vpop.permute.xlu0 %1131
        %1135 = vset.pattern.permute.xlu0 0
        %1136 = vperm.xlu0 %1135, %v1078
        %v1137 = vpop.permute.xlu0 %1136
        %1140 = vset.pattern.permute.xlu0 0
        %1141 = vperm.xlu0 %1140, %v1079
        %v1142 = vpop.permute.xlu0 %1141
        %1145 = vset.pattern.permute.xlu0 0
        %1146 = vperm.xlu0 %1145, %v1080
        %v1147 = vpop.permute.xlu0 %1146
        %1150 = vset.pattern.permute.xlu0 0
        %1151 = vperm.xlu0 %1150, %v1081
        %v1152 = vpop.permute.xlu0 %1151
        %1155 = vset.pattern.permute.xlu0 0
        %1156 = vperm.xlu0 %1155, %v1082
        %v1157 = vpop.permute.xlu0 %1156
        %1160 = vset.pattern.permute.xlu0 0
        %1161 = vperm.xlu0 %1160, %v1083
        %v1162 = vpop.permute.xlu0 %1161
        %vm1164 = vcmask 48128
        %v1166 = vsel %vm1164, %v522, 0
        %v1169 = vsel %vm1164, %v523, 0
        %v1172 = vsel %vm1164, %v524, 0
        %v1175 = vsel %vm1164, %v525, 0
        %v1178 = vsel %vm1164, %v526, 0
        %v1181 = vsel %vm1164, %v527, 0
        %v1184 = vsel %vm1164, %v528, 0
        %v1187 = vsel %vm1164, %v529, 0
        %v1190 = vsel %vm1164, %v530, 0
        %v1193 = vsel %vm1164, %v531, 0
        %v1196 = vsel %vm1164, %v532, 0
        %v1199 = vsel %vm1164, %v533, 0
        %v1202 = vsel %vm1164, %v534, 0
        %v1205 = vsel %vm1164, %v535, 0
        %v1208 = vsel %vm1164, %v536, 0
        %v1211 = vsel %vm1164, %v537, 0
        %v1214 = vsel %vm1164, %v480, 0
        %v1217 = vsel %vm1164, %v481, 0
        %v1220 = vsel %vm1164, %v482, 0
        %v1223 = vsel %vm1164, %v483, 0
        %v1226 = vsel %vm1164, %v484, 0
        %v1229 = vsel %vm1164, %v485, 0
        %v1232 = vsel %vm1164, %v486, 0
        %v1235 = vsel %vm1164, %v487, 0
        %v1238 = vsel %vm1164, %v488, 0
        %v1241 = vsel %vm1164, %v489, 0
        %v1244 = vsel %vm1164, %v490, 0
        %v1247 = vsel %vm1164, %v491, 0
        %v1250 = vsel %vm1164, %v492, 0
        %v1253 = vsel %vm1164, %v493, 0
        %v1256 = vsel %vm1164, %v494, 0
        %v1259 = vsel %vm1164, %v495, 0
        %1261 = vmatprep.subr.mxu0 0.0
        %1262 = vmatpush1.xpose.msra.mxu0 %v1214
        %1263 = vmatprep.subr.mxu0 0.0
        %1264 = vmatpush1.xpose.msra.mxu0 %v1217
        %1265 = vmatprep.subr.mxu0 0.0
        %1266 = vmatpush1.xpose.msra.mxu0 %v1220
        %1267 = vmatprep.subr.mxu0 0.0
        %1268 = vmatpush1.xpose.msra.mxu0 %v1223
        %1269 = vmatprep.subr.mxu0 0.0
        %1270 = vmatpush1.xpose.msra.mxu0 %v1226
        %1271 = vmatprep.subr.mxu0 0.0
        %1272 = vmatpush1.xpose.msra.mxu0 %v1229
        %1273 = vmatprep.subr.mxu0 0.0
        %1274 = vmatpush1.xpose.msra.mxu0 %v1232
        %1275 = vmatprep.subr.mxu0 0.0
        %1276 = vmatpush1.xpose.msra.mxu0 %v1235
        %1277 = vmatprep.subr.mxu0 0.0
        %1278 = vmatpush1.xpose.msra.mxu0 %v1238
        %1279 = vmatprep.subr.mxu0 0.0
        %1280 = vmatpush1.xpose.msra.mxu0 %v1241
        %1281 = vmatprep.subr.mxu0 0.0
        %1282 = vmatpush1.xpose.msra.mxu0 %v1244
        %1283 = vmatprep.subr.mxu0 0.0
        %1284 = vmatpush1.xpose.msra.mxu0 %v1247
        %1285 = vmatprep.subr.mxu0 0.0
        %1286 = vmatpush1.xpose.msra.mxu0 %v1250
        %1287 = vmatprep.subr.mxu0 0.0
        %1288 = vmatpush1.xpose.msra.mxu0 %v1253
        %1289 = vmatprep.subr.mxu0 0.0
        %1290 = vmatpush1.xpose.msra.mxu0 %v1256
        %1291 = vmatprep.subr.mxu0 0.0
        %1292 = vmatpush1.xpose.msra.mxu0 %v1259
        %1293 = vmatprep.subr.mxu0 0.0
        %1294 = vmatpush1.xpose.msra.mxu0 0.0
        %1295 = vmatprep.subr.mxu0 0.0
        %1296 = vmatpush1.xpose.msra.mxu0 0.0
        %1297 = vmatprep.subr.mxu0 0.0
        %1298 = vmatpush1.xpose.msra.mxu0 0.0
        %1299 = vmatprep.subr.mxu0 0.0
        %1300 = vmatpush1.xpose.msra.mxu0 0.0
        %1301 = vmatprep.subr.mxu0 0.0
        %1302 = vmatpush1.xpose.msra.mxu0 0.0
        %1303 = vmatprep.subr.mxu0 0.0
        %1304 = vmatpush1.xpose.msra.mxu0 0.0
        %1305 = vmatprep.subr.mxu0 0.0
        %1306 = vmatpush1.xpose.msra.mxu0 0.0
        %1307 = vmatprep.subr.mxu0 0.0
        %1308 = vmatpush1.xpose.msra.mxu0 0.0
        %1309 = vmatprep.subr.mxu0 0.0
        %1310 = vmatpush1.xpose.msra.mxu0 0.0
        %1311 = vmatprep.subr.mxu0 0.0
        %1312 = vmatpush1.xpose.msra.mxu0 0.0
        %1313 = vmatprep.subr.mxu0 0.0
        %1314 = vmatpush1.xpose.msra.mxu0 0.0
        %1315 = vmatprep.subr.mxu0 0.0
        %1316 = vmatpush1.xpose.msra.mxu0 0.0
        %1317 = vmatprep.subr.mxu0 0.0
        %1318 = vmatpush1.xpose.msra.mxu0 0.0
        %1319 = vmatprep.subr.mxu0 0.0
        %1320 = vmatpush1.xpose.msra.mxu0 0.0
        %1321 = vmatprep.subr.mxu0 0.0
        %1322 = vmatpush1.xpose.msra.mxu0 0.0
        %1323 = vmatprep.subr.mxu0 0.0
        %1324 = vmatpush1.xpose.msra.mxu0 0.0
        %1325 = vmatprep.mubr.f32.mxu0 0.0
        %1326 = vmatmul.mubr.f32.gmra.mrb[0].mxu0 %v1166
        %v1327 = vpop.f32.mrb[0].mxu0
        %v1328 = vadd.f32 %v1087, %v1327
        %v1329 = vpop.f32.mrb[0].mxu0
        %1330 = vmatprep.mubr.f32.mxu0 0.0
        %1331 = vmatmul.mubr.f32.gmra.mrb[0].mxu0 %v1169
        %v1332 = vpop.f32.mrb[0].mxu0
        %v1333 = vadd.f32 %v1092, %v1332
        %v1334 = vpop.f32.mrb[0].mxu0
        %1335 = vmatprep.mubr.f32.mxu0 0.0
        %1336 = vmatmul.mubr.f32.gmra.mrb[0].mxu0 %v1172
        %v1337 = vpop.f32.mrb[0].mxu0
        %v1338 = vadd.f32 %v1097, %v1337
        %v1339 = vpop.f32.mrb[0].mxu0
        %1340 = vmatprep.mubr.f32.mxu0 0.0
        %1341 = vmatmul.mubr.f32.gmra.mrb[0].mxu0 %v1175
        %v1342 = vpop.f32.mrb[0].mxu0
        %v1343 = vadd.f32 %v1102, %v1342
        %v1344 = vpop.f32.mrb[0].mxu0
        %1345 = vmatprep.mubr.f32.mxu0 0.0
        %1346 = vmatmul.mubr.f32.gmra.mrb[0].mxu0 %v1178
        %v1347 = vpop.f32.mrb[0].mxu0
        %v1348 = vadd.f32 %v1107, %v1347
        %v1349 = vpop.f32.mrb[0].mxu0
        %1350 = vmatprep.mubr.f32.mxu0 0.0
        %1351 = vmatmul.mubr.f32.gmra.mrb[0].mxu0 %v1181
        %v1352 = vpop.f32.mrb[0].mxu0
        %v1353 = vadd.f32 %v1112, %v1352
        %v1354 = vpop.f32.mrb[0].mxu0
        %1355 = vmatprep.mubr.f32.mxu0 0.0
        %1356 = vmatmul.mubr.f32.gmra.mrb[0].mxu0 %v1184
        %v1357 = vpop.f32.mrb[0].mxu0
        %v1358 = vadd.f32 %v1117, %v1357
        %v1359 = vpop.f32.mrb[0].mxu0
        %1360 = vmatprep.mubr.f32.mxu0 0.0
        %1361 = vmatmul.mubr.f32.gmra.mrb[0].mxu0 %v1187
        %v1362 = vpop.f32.mrb[0].mxu0
        %v1363 = vadd.f32 %v1122, %v1362
        %v1364 = vpop.f32.mrb[0].mxu0
        %1365 = vmatprep.mubr.f32.mxu0 0.0
        %1366 = vmatmul.mubr.f32.gmra.mrb[0].mxu0 %v1190
        %v1367 = vpop.f32.mrb[0].mxu0
        %v1368 = vadd.f32 %v1127, %v1367
        %v1369 = vpop.f32.mrb[0].mxu0
        %1370 = vmatprep.mubr.f32.mxu0 0.0
        %1371 = vmatmul.mubr.f32.gmra.mrb[0].mxu0 %v1193
        %v1372 = vpop.f32.mrb[0].mxu0
        %v1373 = vadd.f32 %v1132, %v1372
        %v1374 = vpop.f32.mrb[0].mxu0
        %1375 = vmatprep.mubr.f32.mxu0 0.0
        %1376 = vmatmul.mubr.f32.gmra.mrb[0].mxu0 %v1196
        %v1377 = vpop.f32.mrb[0].mxu0
        %v1378 = vadd.f32 %v1137, %v1377
        %v1379 = vpop.f32.mrb[0].mxu0
        %1380 = vmatprep.mubr.f32.mxu0 0.0
        %1381 = vmatmul.mubr.f32.gmra.mrb[0].mxu0 %v1199
        %v1382 = vpop.f32.mrb[0].mxu0
        %v1383 = vadd.f32 %v1142, %v1382
        %v1384 = vpop.f32.mrb[0].mxu0
        %1385 = vmatprep.mubr.f32.mxu0 0.0
        %1386 = vmatmul.mubr.f32.gmra.mrb[0].mxu0 %v1202
        %v1387 = vpop.f32.mrb[0].mxu0
        %v1388 = vadd.f32 %v1147, %v1387
        %v1389 = vpop.f32.mrb[0].mxu0
        %1390 = vmatprep.mubr.f32.mxu0 0.0
        %1391 = vmatmul.mubr.f32.gmra.mrb[0].mxu0 %v1205
        %v1392 = vpop.f32.mrb[0].mxu0
        %v1393 = vadd.f32 %v1152, %v1392
        %v1394 = vpop.f32.mrb[0].mxu0
        %1395 = vmatprep.mubr.f32.mxu0 0.0
        %1396 = vmatmul.mubr.f32.gmra.mrb[0].mxu0 %v1208
        %v1397 = vpop.f32.mrb[0].mxu0
        %v1398 = vadd.f32 %v1157, %v1397
        %v1399 = vpop.f32.mrb[0].mxu0
        %1400 = vmatprep.mubr.f32.mxu0 0.0
        %1401 = vmatmul.mubr.f32.gmra.mrb[0].mxu0 %v1211
        %v1402 = vpop.f32.mrb[0].mxu0
        %v1403 = vadd.f32 %v1162, %v1402
        %v1404 = vpop.f32.mrb[0].mxu0
        %1405 = vdwg.mxu0
        %v1406 = vmul.f32 %v1328, 0.2
        %v1407 = vmul.f32 %v1333, 0.2
        %v1408 = vmul.f32 %v1338, 0.2
        %v1409 = vmul.f32 %v1343, 0.2
        %v1410 = vmul.f32 %v1348, 0.2
        %v1411 = vmul.f32 %v1353, 0.2
        %v1412 = vmul.f32 %v1358, 0.2
        %v1413 = vmul.f32 %v1363, 0.2
        %v1414 = vmul.f32 %v1368, 0.2
        %v1415 = vmul.f32 %v1373, 0.2
        %v1416 = vmul.f32 %v1378, 0.2
        %v1417 = vmul.f32 %v1383, 0.2
        %v1418 = vmul.f32 %v1388, 0.2
        %v1419 = vmul.f32 %v1393, 0.2
        %v1420 = vmul.f32 %v1398, 0.2
        %v1421 = vmul.f32 %v1403, 0.2
        %v1422 = vmax.f32 %v1328, %v1406
        %v1423 = vmax.f32 %v1333, %v1407
        %v1424 = vmax.f32 %v1338, %v1408
        %v1425 = vmax.f32 %v1343, %v1409
        %v1426 = vmax.f32 %v1348, %v1410
        %v1427 = vmax.f32 %v1353, %v1411
        %v1428 = vmax.f32 %v1358, %v1412
        %v1429 = vmax.f32 %v1363, %v1413
        %v1430 = vmax.f32 %v1368, %v1414
        %v1431 = vmax.f32 %v1373, %v1415
        %v1432 = vmax.f32 %v1378, %v1416
        %v1433 = vmax.f32 %v1383, %v1417
        %v1434 = vmax.f32 %v1388, %v1418
        %v1435 = vmax.f32 %v1393, %v1419
        %v1436 = vmax.f32 %v1398, %v1420
        %v1437 = vmax.f32 %v1403, %v1421
        %v1438 = vld [vmem:[%s6] sm:$0xff]
        %v1439 = vld [vmem:[%s6 + $0x8] sm:$0xff]
        %v1440 = vld [vmem:[%s6 + $0x10] sm:$0xff]
        %v1441 = vld [vmem:[%s6 + $0x18] sm:$0xff]
        %v1442 = vld [vmem:[%s6 + $0x20] sm:$0xff]
        %v1443 = vld [vmem:[%s6 + $0x28] sm:$0xff]
        %v1444 = vld [vmem:[%s6 + $0x30] sm:$0xff]
        %v1445 = vld [vmem:[%s6 + $0x38] sm:$0xff]
        %v1446 = vld [vmem:[%s6 + $0x40] sm:$0xff]
        %v1447 = vld [vmem:[%s6 + $0x48] sm:$0xff]
        %v1448 = vld [vmem:[%s6 + $0x50] sm:$0xff]
        %v1449 = vld [vmem:[%s6 + $0x58] sm:$0xff]
        %v1450 = vld [vmem:[%s6 + $0x60] sm:$0xff]
        %v1451 = vld [vmem:[%s6 + $0x68] sm:$0xff]
        %v1452 = vld [vmem:[%s6 + $0x70] sm:$0xff]
        %v1453 = vld [vmem:[%s6 + $0x78] sm:$0xff]
        %v1454 = vld [vmem:[%s6 + $0x80] sm:$0xff]
        %v1455 = vld [vmem:[%s6 + $0x88] sm:$0xff]
        %v1456 = vld [vmem:[%s6 + $0x90] sm:$0xff]
        %v1457 = vld [vmem:[%s6 + $0x98] sm:$0xff]
        %v1458 = vld [vmem:[%s6 + $0xa0] sm:$0xff]
        %v1459 = vld [vmem:[%s6 + $0xa8] sm:$0xff]
        %v1460 = vld [vmem:[%s6 + $0xb0] sm:$0xff]
        %v1461 = vld [vmem:[%s6 + $0xb8] sm:$0xff]
        %v1462 = vld [vmem:[%s6 + $0xc0] sm:$0xff]
        %v1463 = vld [vmem:[%s6 + $0xc8] sm:$0xff]
        %v1464 = vld [vmem:[%s6 + $0xd0] sm:$0xff]
        %v1465 = vld [vmem:[%s6 + $0xd8] sm:$0xff]
        %v1466 = vld [vmem:[%s6 + $0xe0] sm:$0xff]
        %v1467 = vld [vmem:[%s6 + $0xe8] sm:$0xff]
        %v1468 = vld [vmem:[%s6 + $0xf0] sm:$0xff]
        %v1469 = vld [vmem:[%s6 + $0xf8] sm:$0xff]
        %v1470 = vld [vmem:[%s7] sm:$0xff]
        %v1471 = vld [vmem:[%s7 + $0x8] sm:$0xff]
        %v1472 = vld [vmem:[%s7 + $0x10] sm:$0xff]
        %v1473 = vld [vmem:[%s7 + $0x18] sm:$0xff]
        %v1474 = vld [vmem:[%s7 + $0x20] sm:$0xff]
        %v1475 = vld [vmem:[%s7 + $0x28] sm:$0xff]
        %v1476 = vld [vmem:[%s7 + $0x30] sm:$0xff]
        %v1477 = vld [vmem:[%s7 + $0x38] sm:$0xff]
        %v1478 = vld [vmem:[%s7 + $0x40] sm:$0xff]
        %v1479 = vld [vmem:[%s7 + $0x48] sm:$0xff]
        %v1480 = vld [vmem:[%s7 + $0x50] sm:$0xff]
        %v1481 = vld [vmem:[%s7 + $0x58] sm:$0xff]
        %v1482 = vld [vmem:[%s7 + $0x60] sm:$0xff]
        %v1483 = vld [vmem:[%s7 + $0x68] sm:$0xff]
        %v1484 = vld [vmem:[%s7 + $0x70] sm:$0xff]
        %v1485 = vld [vmem:[%s7 + $0x78] sm:$0xff]
        %1486 = vmatprep.subr.mxu0 0.0
        %1487 = vmatpush1.msra.mxu0 %v1422
        %1488 = vmatprep.subr.mxu0 0.0
        %1489 = vmatpush1.msra.mxu0 %v1423
        %1490 = vmatprep.subr.mxu0 0.0
        %1491 = vmatpush1.msra.mxu0 %v1424
        %1492 = vmatprep.subr.mxu0 0.0
        %1493 = vmatpush1.msra.mxu0 %v1425
        %1494 = vmatprep.subr.mxu0 0.0
        %1495 = vmatpush1.msra.mxu0 %v1426
        %1496 = vmatprep.subr.mxu0 0.0
        %1497 = vmatpush1.msra.mxu0 %v1427
        %1498 = vmatprep.subr.mxu0 0.0
        %1499 = vmatpush1.msra.mxu0 %v1428
        %1500 = vmatprep.subr.mxu0 0.0
        %1501 = vmatpush1.msra.mxu0 %v1429
        %1502 = vmatprep.subr.mxu0 0.0
        %1503 = vmatpush1.msra.mxu0 %v1430
        %1504 = vmatprep.subr.mxu0 0.0
        %1505 = vmatpush1.msra.mxu0 %v1431
        %1506 = vmatprep.subr.mxu0 0.0
        %1507 = vmatpush1.msra.mxu0 %v1432
        %1508 = vmatprep.subr.mxu0 0.0
        %1509 = vmatpush1.msra.mxu0 %v1433
        %1510 = vmatprep.subr.mxu0 0.0
        %1511 = vmatpush1.msra.mxu0 %v1434
        %1512 = vmatprep.subr.mxu0 0.0
        %1513 = vmatpush1.msra.mxu0 %v1435
        %1514 = vmatprep.subr.mxu0 0.0
        %1515 = vmatpush1.msra.mxu0 %v1436
        %1516 = vmatprep.subr.mxu0 0.0
        %1517 = vmatpush1.msra.mxu0 %v1437
        %1518 = vmatprep.subr.mxu0 0.0
        %1519 = vmatpush1.msra.mxu0 0.0
        %1520 = vmatprep.subr.mxu0 0.0
        %1521 = vmatpush1.msra.mxu0 0.0
        %1522 = vmatprep.subr.mxu0 0.0
        %1523 = vmatpush1.msra.mxu0 0.0
        %1524 = vmatprep.subr.mxu0 0.0
        %1525 = vmatpush1.msra.mxu0 0.0
        %1526 = vmatprep.subr.mxu0 0.0
        %1527 = vmatpush1.msra.mxu0 0.0
        %1528 = vmatprep.subr.mxu0 0.0
        %1529 = vmatpush1.msra.mxu0 0.0
        %1530 = vmatprep.subr.mxu0 0.0
        %1531 = vmatpush1.msra.mxu0 0.0
        %1532 = vmatprep.subr.mxu0 0.0
        %1533 = vmatpush1.msra.mxu0 0.0
        %1534 = vmatprep.subr.mxu0 0.0
        %1535 = vmatpush1.msra.mxu0 0.0
        %1536 = vmatprep.subr.mxu0 0.0
        %1537 = vmatpush1.msra.mxu0 0.0
        %1538 = vmatprep.subr.mxu0 0.0
        %1539 = vmatpush1.msra.mxu0 0.0
        %1540 = vmatprep.subr.mxu0 0.0
        %1541 = vmatpush1.msra.mxu0 0.0
        %1542 = vmatprep.subr.mxu0 0.0
        %1543 = vmatpush1.msra.mxu0 0.0
        %1544 = vmatprep.subr.mxu0 0.0
        %1545 = vmatpush1.msra.mxu0 0.0
        %1546 = vmatprep.subr.mxu0 0.0
        %1547 = vmatpush1.msra.mxu0 0.0
        %1548 = vmatprep.subr.mxu0 0.0
        %1549 = vmatpush1.msra.mxu0 0.0
        %1550 = vmatprep.mubr.f32.mxu0 0.0
        %1551 = vmatmul.mubr.f32.gmra.mrb[0].mxu0 %v1470
        %v1552 = vpop.f32.mrb[0].mxu0
        %v1553 = vadd.f32 0.0, %v1552
        %v1554 = vpop.f32.mrb[0].mxu0
        %1555 = vmatprep.mubr.f32.mxu0 0.0
        %1556 = vmatmul.mubr.f32.gmra.mrb[0].mxu0 %v1471
        %v1557 = vpop.f32.mrb[0].mxu0
        %v1558 = vadd.f32 0.0, %v1557
        %v1559 = vpop.f32.mrb[0].mxu0
        %1560 = vmatprep.mubr.f32.mxu0 0.0
        %1561 = vmatmul.mubr.f32.gmra.mrb[0].mxu0 %v1472
        %v1562 = vpop.f32.mrb[0].mxu0
        %v1563 = vadd.f32 0.0, %v1562
        %v1564 = vpop.f32.mrb[0].mxu0
        %1565 = vmatprep.mubr.f32.mxu0 0.0
        %1566 = vmatmul.mubr.f32.gmra.mrb[0].mxu0 %v1473
        %v1567 = vpop.f32.mrb[0].mxu0
        %v1568 = vadd.f32 0.0, %v1567
        %v1569 = vpop.f32.mrb[0].mxu0
        %1570 = vmatprep.mubr.f32.mxu0 0.0
        %1571 = vmatmul.mubr.f32.gmra.mrb[0].mxu0 %v1474
        %v1572 = vpop.f32.mrb[0].mxu0
        %v1573 = vadd.f32 0.0, %v1572
        %v1574 = vpop.f32.mrb[0].mxu0
        %1575 = vmatprep.mubr.f32.mxu0 0.0
        %1576 = vmatmul.mubr.f32.gmra.mrb[0].mxu0 %v1475
        %v1577 = vpop.f32.mrb[0].mxu0
        %v1578 = vadd.f32 0.0, %v1577
        %v1579 = vpop.f32.mrb[0].mxu0
        %1580 = vmatprep.mubr.f32.mxu0 0.0
        %1581 = vmatmul.mubr.f32.gmra.mrb[0].mxu0 %v1476
        %v1582 = vpop.f32.mrb[0].mxu0
        %v1583 = vadd.f32 0.0, %v1582
        %v1584 = vpop.f32.mrb[0].mxu0
        %1585 = vmatprep.mubr.f32.mxu0 0.0
        %1586 = vmatmul.mubr.f32.gmra.mrb[0].mxu0 %v1477
        %v1587 = vpop.f32.mrb[0].mxu0
        %v1588 = vadd.f32 0.0, %v1587
        %v1589 = vpop.f32.mrb[0].mxu0
        %1590 = vmatprep.mubr.f32.mxu0 0.0
        %1591 = vmatmul.mubr.f32.gmra.mrb[0].mxu0 %v1478
        %v1592 = vpop.f32.mrb[0].mxu0
        %v1593 = vadd.f32 0.0, %v1592
        %v1594 = vpop.f32.mrb[0].mxu0
        %1595 = vmatprep.mubr.f32.mxu0 0.0
        %1596 = vmatmul.mubr.f32.gmra.mrb[0].mxu0 %v1479
        %v1597 = vpop.f32.mrb[0].mxu0
        %v1598 = vadd.f32 0.0, %v1597
        %v1599 = vpop.f32.mrb[0].mxu0
        %1600 = vmatprep.mubr.f32.mxu0 0.0
        %1601 = vmatmul.mubr.f32.gmra.mrb[0].mxu0 %v1480
        %v1602 = vpop.f32.mrb[0].mxu0
        %v1603 = vadd.f32 0.0, %v1602
        %v1604 = vpop.f32.mrb[0].mxu0
        %1605 = vmatprep.mubr.f32.mxu0 0.0
        %1606 = vmatmul.mubr.f32.gmra.mrb[0].mxu0 %v1481
        %v1607 = vpop.f32.mrb[0].mxu0
        %v1608 = vadd.f32 0.0, %v1607
        %v1609 = vpop.f32.mrb[0].mxu0
        %1610 = vmatprep.mubr.f32.mxu0 0.0
        %1611 = vmatmul.mubr.f32.gmra.mrb[0].mxu0 %v1482
        %v1612 = vpop.f32.mrb[0].mxu0
        %v1613 = vadd.f32 0.0, %v1612
        %v1614 = vpop.f32.mrb[0].mxu0
        %1615 = vmatprep.mubr.f32.mxu0 0.0
        %1616 = vmatmul.mubr.f32.gmra.mrb[0].mxu0 %v1483
        %v1617 = vpop.f32.mrb[0].mxu0
        %v1618 = vadd.f32 0.0, %v1617
        %v1619 = vpop.f32.mrb[0].mxu0
        %1620 = vmatprep.mubr.f32.mxu0 0.0
        %1621 = vmatmul.mubr.f32.gmra.mrb[0].mxu0 %v1484
        %v1622 = vpop.f32.mrb[0].mxu0
        %v1623 = vadd.f32 0.0, %v1622
        %v1624 = vpop.f32.mrb[0].mxu0
        %1625 = vmatprep.mubr.f32.mxu0 0.0
        %1626 = vmatmul.mubr.f32.gmra.mrb[0].mxu0 %v1485
        %v1627 = vpop.f32.mrb[0].mxu0
        %v1628 = vadd.f32 0.0, %v1627
        %v1629 = vpop.f32.mrb[0].mxu0
        %1630 = vdwg.mxu0
        %vm1631 = vcmask 654336
        %v1633 = vsel %vm1631, %v1439, 0
        %v1636 = vsel %vm1631, %v1441, 0
        %v1639 = vsel %vm1631, %v1443, 0
        %v1642 = vsel %vm1631, %v1445, 0
        %v1645 = vsel %vm1631, %v1447, 0
        %v1648 = vsel %vm1631, %v1449, 0
        %v1651 = vsel %vm1631, %v1451, 0
        %v1654 = vsel %vm1631, %v1453, 0
        %v1657 = vsel %vm1631, %v1455, 0
        %v1660 = vsel %vm1631, %v1457, 0
        %v1663 = vsel %vm1631, %v1459, 0
        %v1666 = vsel %vm1631, %v1461, 0
        %v1669 = vsel %vm1631, %v1463, 0
        %v1672 = vsel %vm1631, %v1465, 0
        %v1675 = vsel %vm1631, %v1467, 0
        %v1678 = vsel %vm1631, %v1469, 0
        %1680 = vmatprep.subr.mxu0 0.0
        %1681 = vmatpush1.msra.mxu0 %v1042
        %1682 = vmatprep.subr.mxu0 0.0
        %1683 = vmatpush1.msra.mxu0 %v1043
        %1684 = vmatprep.subr.mxu0 0.0
        %1685 = vmatpush1.msra.mxu0 %v1044
        %1686 = vmatprep.subr.mxu0 0.0
        %1687 = vmatpush1.msra.mxu0 %v1045
        %1688 = vmatprep.subr.mxu0 0.0
        %1689 = vmatpush1.msra.mxu0 %v1046
        %1690 = vmatprep.subr.mxu0 0.0
        %1691 = vmatpush1.msra.mxu0 %v1047
        %1692 = vmatprep.subr.mxu0 0.0
        %1693 = vmatpush1.msra.mxu0 %v1048
        %1694 = vmatprep.subr.mxu0 0.0
        %1695 = vmatpush1.msra.mxu0 %v1049
        %1696 = vmatprep.subr.mxu0 0.0
        %1697 = vmatpush1.msra.mxu0 %v1050
        %1698 = vmatprep.subr.mxu0 0.0
        %1699 = vmatpush1.msra.mxu0 %v1051
        %1700 = vmatprep.subr.mxu0 0.0
        %1701 = vmatpush1.msra.mxu0 %v1052
        %1702 = vmatprep.subr.mxu0 0.0
        %1703 = vmatpush1.msra.mxu0 %v1053
        %1704 = vmatprep.subr.mxu0 0.0
        %1705 = vmatpush1.msra.mxu0 %v1054
        %1706 = vmatprep.subr.mxu0 0.0
        %1707 = vmatpush1.msra.mxu0 %v1055
        %1708 = vmatprep.subr.mxu0 0.0
        %1709 = vmatpush1.msra.mxu0 %v1056
        %1710 = vmatprep.subr.mxu0 0.0
        %1711 = vmatpush1.msra.mxu0 %v1057
        %1712 = vmatprep.subr.mxu0 0.0
        %1713 = vmatpush1.msra.mxu0 %v1058
        %1714 = vmatprep.subr.mxu0 0.0
        %1715 = vmatpush1.msra.mxu0 %v1059
        %1716 = vmatprep.subr.mxu0 0.0
        %1717 = vmatpush1.msra.mxu0 %v1060
        %1718 = vmatprep.subr.mxu0 0.0
        %1719 = vmatpush1.msra.mxu0 %v1061
        %1720 = vmatprep.subr.mxu0 0.0
        %1721 = vmatpush1.msra.mxu0 %v1062
        %1722 = vmatprep.subr.mxu0 0.0
        %1723 = vmatpush1.msra.mxu0 %v1063
        %1724 = vmatprep.subr.mxu0 0.0
        %1725 = vmatpush1.msra.mxu0 %v1064
        %1726 = vmatprep.subr.mxu0 0.0
        %1727 = vmatpush1.msra.mxu0 %v1065
        %1728 = vmatprep.subr.mxu0 0.0
        %1729 = vmatpush1.msra.mxu0 %v1066
        %1730 = vmatprep.subr.mxu0 0.0
        %1731 = vmatpush1.msra.mxu0 %v1067
        %1732 = vmatprep.subr.mxu0 0.0
        %1733 = vmatpush1.msra.mxu0 0.0
        %1734 = vmatprep.subr.mxu0 0.0
        %1735 = vmatpush1.msra.mxu0 0.0
        %1736 = vmatprep.subr.mxu0 0.0
        %1737 = vmatpush1.msra.mxu0 0.0
        %1738 = vmatprep.subr.mxu0 0.0
        %1739 = vmatpush1.msra.mxu0 0.0
        %1740 = vmatprep.subr.mxu0 0.0
        %1741 = vmatpush1.msra.mxu0 0.0
        %1742 = vmatprep.subr.mxu0 0.0
        %1743 = vmatpush1.msra.mxu0 0.0
        %1744 = vmatprep.mubr.f32.mxu0 %v1633
        %1745 = vmatmul.mubr.f32.gmra.mrb[0].mxu0 %v1438
        %v1746 = vpop.f32.mrb[0].mxu0
        %v1747 = vadd.f32 %v1553, %v1746
        %v1748 = vpop.f32.mrb[0].mxu0
        %1749 = vmatprep.mubr.f32.mxu0 %v1636
        %1750 = vmatmul.mubr.f32.gmra.mrb[0].mxu0 %v1440
        %v1751 = vpop.f32.mrb[0].mxu0
        %v1752 = vadd.f32 %v1558, %v1751
        %v1753 = vpop.f32.mrb[0].mxu0
        %1754 = vmatprep.mubr.f32.mxu0 %v1639
        %1755 = vmatmul.mubr.f32.gmra.mrb[0].mxu0 %v1442
        %v1756 = vpop.f32.mrb[0].mxu0
        %v1757 = vadd.f32 %v1563, %v1756
        %v1758 = vpop.f32.mrb[0].mxu0
        %1759 = vmatprep.mubr.f32.mxu0 %v1642
        %1760 = vmatmul.mubr.f32.gmra.mrb[0].mxu0 %v1444
        %v1761 = vpop.f32.mrb[0].mxu0
        %v1762 = vadd.f32 %v1568, %v1761
        %v1763 = vpop.f32.mrb[0].mxu0
        %1764 = vmatprep.mubr.f32.mxu0 %v1645
        %1765 = vmatmul.mubr.f32.gmra.mrb[0].mxu0 %v1446
        %v1766 = vpop.f32.mrb[0].mxu0
        %v1767 = vadd.f32 %v1573, %v1766
        %v1768 = vpop.f32.mrb[0].mxu0
        %1769 = vmatprep.mubr.f32.mxu0 %v1648
        %1770 = vmatmul.mubr.f32.gmra.mrb[0].mxu0 %v1448
        %v1771 = vpop.f32.mrb[0].mxu0
        %v1772 = vadd.f32 %v1578, %v1771
        %v1773 = vpop.f32.mrb[0].mxu0
        %1774 = vmatprep.mubr.f32.mxu0 %v1651
        %1775 = vmatmul.mubr.f32.gmra.mrb[0].mxu0 %v1450
        %v1776 = vpop.f32.mrb[0].mxu0
        %v1777 = vadd.f32 %v1583, %v1776
        %v1778 = vpop.f32.mrb[0].mxu0
        %1779 = vmatprep.mubr.f32.mxu0 %v1654
        %1780 = vmatmul.mubr.f32.gmra.mrb[0].mxu0 %v1452
        %v1781 = vpop.f32.mrb[0].mxu0
        %v1782 = vadd.f32 %v1588, %v1781
        %v1783 = vpop.f32.mrb[0].mxu0
        %1784 = vmatprep.mubr.f32.mxu0 %v1657
        %1785 = vmatmul.mubr.f32.gmra.mrb[0].mxu0 %v1454
        %v1786 = vpop.f32.mrb[0].mxu0
        %v1787 = vadd.f32 %v1593, %v1786
        %v1788 = vpop.f32.mrb[0].mxu0
        %1789 = vmatprep.mubr.f32.mxu0 %v1660
        %1790 = vmatmul.mubr.f32.gmra.mrb[0].mxu0 %v1456
        %v1791 = vpop.f32.mrb[0].mxu0
        %v1792 = vadd.f32 %v1598, %v1791
        %v1793 = vpop.f32.mrb[0].mxu0
        %1794 = vmatprep.mubr.f32.mxu0 %v1663
        %1795 = vmatmul.mubr.f32.gmra.mrb[0].mxu0 %v1458
        %v1796 = vpop.f32.mrb[0].mxu0
        %v1797 = vadd.f32 %v1603, %v1796
        %v1798 = vpop.f32.mrb[0].mxu0
        %1799 = vmatprep.mubr.f32.mxu0 %v1666
        %1800 = vmatmul.mubr.f32.gmra.mrb[0].mxu0 %v1460
        %v1801 = vpop.f32.mrb[0].mxu0
        %v1802 = vadd.f32 %v1608, %v1801
        %v1803 = vpop.f32.mrb[0].mxu0
        %1804 = vmatprep.mubr.f32.mxu0 %v1669
        %1805 = vmatmul.mubr.f32.gmra.mrb[0].mxu0 %v1462
        %v1806 = vpop.f32.mrb[0].mxu0
        %v1807 = vadd.f32 %v1613, %v1806
        %v1808 = vpop.f32.mrb[0].mxu0
        %1809 = vmatprep.mubr.f32.mxu0 %v1672
        %1810 = vmatmul.mubr.f32.gmra.mrb[0].mxu0 %v1464
        %v1811 = vpop.f32.mrb[0].mxu0
        %v1812 = vadd.f32 %v1618, %v1811
        %v1813 = vpop.f32.mrb[0].mxu0
        %1814 = vmatprep.mubr.f32.mxu0 %v1675
        %1815 = vmatmul.mubr.f32.gmra.mrb[0].mxu0 %v1466
        %v1816 = vpop.f32.mrb[0].mxu0
        %v1817 = vadd.f32 %v1623, %v1816
        %v1818 = vpop.f32.mrb[0].mxu0
        %1819 = vmatprep.mubr.f32.mxu0 %v1678
        %1820 = vmatmul.mubr.f32.gmra.mrb[0].mxu0 %v1468
        %v1821 = vpop.f32.mrb[0].mxu0
        %v1822 = vadd.f32 %v1628, %v1821
        %v1823 = vpop.f32.mrb[0].mxu0
        %1824 = vdwg.mxu0
        %v1825 = vld [vmem:[%s8] sm:$0xff]
        %v1826 = vld [vmem:[%s8 + $0x8] sm:$0xff]
        %v1827 = vld [vmem:[%s8 + $0x10] sm:$0xff]
        %v1828 = vld [vmem:[%s8 + $0x18] sm:$0xff]
        %v1829 = vld [vmem:[%s8 + $0x20] sm:$0xff]
        %v1830 = vld [vmem:[%s8 + $0x28] sm:$0xff]
        %v1831 = vld [vmem:[%s8 + $0x30] sm:$0xff]
        %v1832 = vld [vmem:[%s8 + $0x38] sm:$0xff]
        %v1833 = vld [vmem:[%s8 + $0x40] sm:$0xff]
        %v1834 = vld [vmem:[%s8 + $0x48] sm:$0xff]
        %v1835 = vld [vmem:[%s8 + $0x50] sm:$0xff]
        %v1836 = vld [vmem:[%s8 + $0x58] sm:$0xff]
        %v1837 = vld [vmem:[%s8 + $0x60] sm:$0xff]
        %v1838 = vld [vmem:[%s8 + $0x68] sm:$0xff]
        %v1839 = vld [vmem:[%s8 + $0x70] sm:$0xff]
        %v1840 = vld [vmem:[%s8 + $0x78] sm:$0xff]
        %1842 = vset.pattern.permute.xlu0 0
        %1843 = vperm.xlu0 %1842, %v1825
        %v1844 = vpop.permute.xlu0 %1843
        %1847 = vset.pattern.permute.xlu0 0
        %1848 = vperm.xlu0 %1847, %v1826
        %v1849 = vpop.permute.xlu0 %1848
        %1852 = vset.pattern.permute.xlu0 0
        %1853 = vperm.xlu0 %1852, %v1827
        %v1854 = vpop.permute.xlu0 %1853
        %1857 = vset.pattern.permute.xlu0 0
        %1858 = vperm.xlu0 %1857, %v1828
        %v1859 = vpop.permute.xlu0 %1858
        %1862 = vset.pattern.permute.xlu0 0
        %1863 = vperm.xlu0 %1862, %v1829
        %v1864 = vpop.permute.xlu0 %1863
        %1867 = vset.pattern.permute.xlu0 0
        %1868 = vperm.xlu0 %1867, %v1830
        %v1869 = vpop.permute.xlu0 %1868
        %1872 = vset.pattern.permute.xlu0 0
        %1873 = vperm.xlu0 %1872, %v1831
        %v1874 = vpop.permute.xlu0 %1873
        %1877 = vset.pattern.permute.xlu0 0
        %1878 = vperm.xlu0 %1877, %v1832
        %v1879 = vpop.permute.xlu0 %1878
        %1882 = vset.pattern.permute.xlu0 0
        %1883 = vperm.xlu0 %1882, %v1833
        %v1884 = vpop.permute.xlu0 %1883
        %1887 = vset.pattern.permute.xlu0 0
        %1888 = vperm.xlu0 %1887, %v1834
        %v1889 = vpop.permute.xlu0 %1888
        %1892 = vset.pattern.permute.xlu0 0
        %1893 = vperm.xlu0 %1892, %v1835
        %v1894 = vpop.permute.xlu0 %1893
        %1897 = vset.pattern.permute.xlu0 0
        %1898 = vperm.xlu0 %1897, %v1836
        %v1899 = vpop.permute.xlu0 %1898
        %1902 = vset.pattern.permute.xlu0 0
        %1903 = vperm.xlu0 %1902, %v1837
        %v1904 = vpop.permute.xlu0 %1903
        %1907 = vset.pattern.permute.xlu0 0
        %1908 = vperm.xlu0 %1907, %v1838
        %v1909 = vpop.permute.xlu0 %1908
        %1912 = vset.pattern.permute.xlu0 0
        %1913 = vperm.xlu0 %1912, %v1839
        %v1914 = vpop.permute.xlu0 %1913
        %1917 = vset.pattern.permute.xlu0 0
        %1918 = vperm.xlu0 %1917, %v1840
        %v1919 = vpop.permute.xlu0 %1918
        %v1921 = vadd.f32 %v1747, %v1844
        %v1922 = vadd.f32 %v1752, %v1849
        %v1923 = vadd.f32 %v1757, %v1854
        %v1924 = vadd.f32 %v1762, %v1859
        %v1925 = vadd.f32 %v1767, %v1864
        %v1926 = vadd.f32 %v1772, %v1869
        %v1927 = vadd.f32 %v1777, %v1874
        %v1928 = vadd.f32 %v1782, %v1879
        %v1929 = vadd.f32 %v1787, %v1884
        %v1930 = vadd.f32 %v1792, %v1889
        %v1931 = vadd.f32 %v1797, %v1894
        %v1932 = vadd.f32 %v1802, %v1899
        %v1933 = vadd.f32 %v1807, %v1904
        %v1934 = vadd.f32 %v1812, %v1909
        %v1935 = vadd.f32 %v1817, %v1914
        %v1936 = vadd.f32 %v1822, %v1919
        %v1937 = vmul.f32 %v1921, 0.2
        %v1938 = vmul.f32 %v1922, 0.2
        %v1939 = vmul.f32 %v1923, 0.2
        %v1940 = vmul.f32 %v1924, 0.2
        %v1941 = vmul.f32 %v1925, 0.2
        %v1942 = vmul.f32 %v1926, 0.2
        %v1943 = vmul.f32 %v1927, 0.2
        %v1944 = vmul.f32 %v1928, 0.2
        %v1945 = vmul.f32 %v1929, 0.2
        %v1946 = vmul.f32 %v1930, 0.2
        %v1947 = vmul.f32 %v1931, 0.2
        %v1948 = vmul.f32 %v1932, 0.2
        %v1949 = vmul.f32 %v1933, 0.2
        %v1950 = vmul.f32 %v1934, 0.2
        %v1951 = vmul.f32 %v1935, 0.2
        %v1952 = vmul.f32 %v1936, 0.2
        %v1953 = vmax.f32 %v1921, %v1937
        %v1954 = vmax.f32 %v1922, %v1938
        %v1955 = vmax.f32 %v1923, %v1939
        %v1956 = vmax.f32 %v1924, %v1940
        %v1957 = vmax.f32 %v1925, %v1941
        %v1958 = vmax.f32 %v1926, %v1942
        %v1959 = vmax.f32 %v1927, %v1943
        %v1960 = vmax.f32 %v1928, %v1944
        %v1961 = vmax.f32 %v1929, %v1945
        %v1962 = vmax.f32 %v1930, %v1946
        %v1963 = vmax.f32 %v1931, %v1947
        %v1964 = vmax.f32 %v1932, %v1948
        %v1965 = vmax.f32 %v1933, %v1949
        %v1966 = vmax.f32 %v1934, %v1950
        %v1967 = vmax.f32 %v1935, %v1951
        %v1968 = vmax.f32 %v1936, %v1952
        %v1969 = vld [vmem:[%s9] sm:$0xff]
        %v1970 = vld [vmem:[%s9 + $0x8] sm:$0xff]
        %v1971 = vld [vmem:[%s9 + $0x10] sm:$0xff]
        %v1972 = vld [vmem:[%s9 + $0x18] sm:$0xff]
        %v1973 = vld [vmem:[%s9 + $0x20] sm:$0xff]
        %v1974 = vld [vmem:[%s9 + $0x28] sm:$0xff]
        %v1975 = vld [vmem:[%s9 + $0x30] sm:$0xff]
        %v1976 = vld [vmem:[%s9 + $0x38] sm:$0xff]
        %v1977 = vld [vmem:[%s10] sm:$0xff]
        %v1978 = vld [vmem:[%s10 + $0x8] sm:$0xff]
        %v1979 = vld [vmem:[%s10 + $0x10] sm:$0xff]
        %v1980 = vld [vmem:[%s10 + $0x18] sm:$0xff]
        %v1981 = vld [vmem:[%s10 + $0x20] sm:$0xff]
        %v1982 = vld [vmem:[%s10 + $0x28] sm:$0xff]
        %v1983 = vld [vmem:[%s10 + $0x30] sm:$0xff]
        %v1984 = vld [vmem:[%s10 + $0x38] sm:$0xff]
        %1986 = vset.pattern.permute.xlu0 0
        %1987 = vperm.xlu0 %1986, %v1977
        %v1988 = vpop.permute.xlu0 %1987
        %1991 = vset.pattern.permute.xlu0 0
        %1992 = vperm.xlu0 %1991, %v1978
        %v1993 = vpop.permute.xlu0 %1992
        %1996 = vset.pattern.permute.xlu0 0
        %1997 = vperm.xlu0 %1996, %v1979
        %v1998 = vpop.permute.xlu0 %1997
        %2001 = vset.pattern.permute.xlu0 0
        %2002 = vperm.xlu0 %2001, %v1980
        %v2003 = vpop.permute.xlu0 %2002
        %2006 = vset.pattern.permute.xlu0 0
        %2007 = vperm.xlu0 %2006, %v1981
        %v2008 = vpop.permute.xlu0 %2007
        %2011 = vset.pattern.permute.xlu0 0
        %2012 = vperm.xlu0 %2011, %v1982
        %v2013 = vpop.permute.xlu0 %2012
        %2016 = vset.pattern.permute.xlu0 0
        %2017 = vperm.xlu0 %2016, %v1983
        %v2018 = vpop.permute.xlu0 %2017
        %2021 = vset.pattern.permute.xlu0 0
        %2022 = vperm.xlu0 %2021, %v1984
        %v2023 = vpop.permute.xlu0 %2022
        %2025 = vmatprep.subr.mxu0 0.0
        %2026 = vmatpush1.msra.mxu0 %v1953
        %2027 = vmatprep.subr.mxu0 0.0
        %2028 = vmatpush1.msra.mxu0 %v1954
        %2029 = vmatprep.subr.mxu0 0.0
        %2030 = vmatpush1.msra.mxu0 %v1955
        %2031 = vmatprep.subr.mxu0 0.0
        %2032 = vmatpush1.msra.mxu0 %v1956
        %2033 = vmatprep.subr.mxu0 0.0
        %2034 = vmatpush1.msra.mxu0 %v1957
        %2035 = vmatprep.subr.mxu0 0.0
        %2036 = vmatpush1.msra.mxu0 %v1958
        %2037 = vmatprep.subr.mxu0 0.0
        %2038 = vmatpush1.msra.mxu0 %v1959
        %2039 = vmatprep.subr.mxu0 0.0
        %2040 = vmatpush1.msra.mxu0 %v1960
        %2041 = vmatprep.subr.mxu0 0.0
        %2042 = vmatpush1.msra.mxu0 %v1961
        %2043 = vmatprep.subr.mxu0 0.0
        %2044 = vmatpush1.msra.mxu0 %v1962
        %2045 = vmatprep.subr.mxu0 0.0
        %2046 = vmatpush1.msra.mxu0 %v1963
        %2047 = vmatprep.subr.mxu0 0.0
        %2048 = vmatpush1.msra.mxu0 %v1964
        %2049 = vmatprep.subr.mxu0 0.0
        %2050 = vmatpush1.msra.mxu0 %v1965
        %2051 = vmatprep.subr.mxu0 0.0
        %2052 = vmatpush1.msra.mxu0 %v1966
        %2053 = vmatprep.subr.mxu0 0.0
        %2054 = vmatpush1.msra.mxu0 %v1967
        %2055 = vmatprep.subr.mxu0 0.0
        %2056 = vmatpush1.msra.mxu0 %v1968
        %2057 = vmatprep.subr.mxu0 0.0
        %2058 = vmatpush1.msra.mxu0 0.0
        %2059 = vmatprep.subr.mxu0 0.0
        %2060 = vmatpush1.msra.mxu0 0.0
        %2061 = vmatprep.subr.mxu0 0.0
        %2062 = vmatpush1.msra.mxu0 0.0
        %2063 = vmatprep.subr.mxu0 0.0
        %2064 = vmatpush1.msra.mxu0 0.0
        %2065 = vmatprep.subr.mxu0 0.0
        %2066 = vmatpush1.msra.mxu0 0.0
        %2067 = vmatprep.subr.mxu0 0.0
        %2068 = vmatpush1.msra.mxu0 0.0
        %2069 = vmatprep.subr.mxu0 0.0
        %2070 = vmatpush1.msra.mxu0 0.0
        %2071 = vmatprep.subr.mxu0 0.0
        %2072 = vmatpush1.msra.mxu0 0.0
        %2073 = vmatprep.subr.mxu0 0.0
        %2074 = vmatpush1.msra.mxu0 0.0
        %2075 = vmatprep.subr.mxu0 0.0
        %2076 = vmatpush1.msra.mxu0 0.0
        %2077 = vmatprep.subr.mxu0 0.0
        %2078 = vmatpush1.msra.mxu0 0.0
        %2079 = vmatprep.subr.mxu0 0.0
        %2080 = vmatpush1.msra.mxu0 0.0
        %2081 = vmatprep.subr.mxu0 0.0
        %2082 = vmatpush1.msra.mxu0 0.0
        %2083 = vmatprep.subr.mxu0 0.0
        %2084 = vmatpush1.msra.mxu0 0.0
        %2085 = vmatprep.subr.mxu0 0.0
        %2086 = vmatpush1.msra.mxu0 0.0
        %2087 = vmatprep.subr.mxu0 0.0
        %2088 = vmatpush1.msra.mxu0 0.0
        %2089 = vmatprep.mubr.f32.mxu0 0.0
        %2090 = vmatmul.mubr.f32.gmra.mrb[0].mxu0 %v1969
        %v2091 = vpop.f32.mrb[0].mxu0
        %v2092 = vadd.f32 %v1988, %v2091
        %v2093 = vpop.f32.mrb[0].mxu0
        %2094 = vmatprep.mubr.f32.mxu0 0.0
        %2095 = vmatmul.mubr.f32.gmra.mrb[0].mxu0 %v1970
        %v2096 = vpop.f32.mrb[0].mxu0
        %v2097 = vadd.f32 %v1993, %v2096
        %v2098 = vpop.f32.mrb[0].mxu0
        %2099 = vmatprep.mubr.f32.mxu0 0.0
        %2100 = vmatmul.mubr.f32.gmra.mrb[0].mxu0 %v1971
        %v2101 = vpop.f32.mrb[0].mxu0
        %v2102 = vadd.f32 %v1998, %v2101
        %v2103 = vpop.f32.mrb[0].mxu0
        %2104 = vmatprep.mubr.f32.mxu0 0.0
        %2105 = vmatmul.mubr.f32.gmra.mrb[0].mxu0 %v1972
        %v2106 = vpop.f32.mrb[0].mxu0
        %v2107 = vadd.f32 %v2003, %v2106
        %v2108 = vpop.f32.mrb[0].mxu0
        %2109 = vmatprep.mubr.f32.mxu0 0.0
        %2110 = vmatmul.mubr.f32.gmra.mrb[0].mxu0 %v1973
        %v2111 = vpop.f32.mrb[0].mxu0
        %v2112 = vadd.f32 %v2008, %v2111
        %v2113 = vpop.f32.mrb[0].mxu0
        %2114 = vmatprep.mubr.f32.mxu0 0.0
        %2115 = vmatmul.mubr.f32.gmra.mrb[0].mxu0 %v1974
        %v2116 = vpop.f32.mrb[0].mxu0
        %v2117 = vadd.f32 %v2013, %v2116
        %v2118 = vpop.f32.mrb[0].mxu0
        %2119 = vmatprep.mubr.f32.mxu0 0.0
        %2120 = vmatmul.mubr.f32.gmra.mrb[0].mxu0 %v1975
        %v2121 = vpop.f32.mrb[0].mxu0
        %v2122 = vadd.f32 %v2018, %v2121
        %v2123 = vpop.f32.mrb[0].mxu0
        %2124 = vmatprep.mubr.f32.mxu0 0.0
        %2125 = vmatmul.mubr.f32.gmra.mrb[0].mxu0 %v1976
        %v2126 = vpop.f32.mrb[0].mxu0
        %v2127 = vadd.f32 %v2023, %v2126
        %v2128 = vpop.f32.mrb[0].mxu0
        %2129 = vdwg.mxu0
        %v2130 = vmul.f32 %v2092, 0.2
        %v2131 = vmul.f32 %v2097, 0.2
        %v2132 = vmul.f32 %v2102, 0.2
        %v2133 = vmul.f32 %v2107, 0.2
        %v2134 = vmul.f32 %v2112, 0.2
        %v2135 = vmul.f32 %v2117, 0.2
        %v2136 = vmul.f32 %v2122, 0.2
        %v2137 = vmul.f32 %v2127, 0.2
        %v2138 = vmax.f32 %v2092, %v2130
        %v2139 = vmax.f32 %v2097, %v2131
        %v2140 = vmax.f32 %v2102, %v2132
        %v2141 = vmax.f32 %v2107, %v2133
        %v2142 = vmax.f32 %v2112, %v2134
        %v2143 = vmax.f32 %v2117, %v2135
        %v2144 = vmax.f32 %v2122, %v2136
        %v2145 = vmax.f32 %v2127, %v2137
        %v2146 = vld [vmem:[%s11] sm:$0xff]
        %v2147 = vld [vmem:[%s11 + $0x8] sm:$0xff]
        %v2148 = vld [vmem:[%s11 + $0x10] sm:$0xff]
        %v2149 = vld [vmem:[%s11 + $0x18] sm:$0xff]
        %v2150 = vld [vmem:[%s11 + $0x20] sm:$0xff]
        %v2151 = vld [vmem:[%s11 + $0x28] sm:$0xff]
        %v2152 = vld [vmem:[%s11 + $0x30] sm:$0xff]
        %v2153 = vld [vmem:[%s11 + $0x38] sm:$0xff]
        %2155 = vset.pattern.permute.xlu0 0
        %2156 = vperm.xlu0 %2155, %v2146
        %v2157 = vpop.permute.xlu0 %2156
        %2160 = vset.pattern.permute.xlu0 0
        %2161 = vperm.xlu0 %2160, %v2147
        %v2162 = vpop.permute.xlu0 %2161
        %2165 = vset.pattern.permute.xlu0 0
        %2166 = vperm.xlu0 %2165, %v2148
        %v2167 = vpop.permute.xlu0 %2166
        %2170 = vset.pattern.permute.xlu0 0
        %2171 = vperm.xlu0 %2170, %v2149
        %v2172 = vpop.permute.xlu0 %2171
        %2175 = vset.pattern.permute.xlu0 0
        %2176 = vperm.xlu0 %2175, %v2150
        %v2177 = vpop.permute.xlu0 %2176
        %2180 = vset.pattern.permute.xlu0 0
        %2181 = vperm.xlu0 %2180, %v2151
        %v2182 = vpop.permute.xlu0 %2181
        %2185 = vset.pattern.permute.xlu0 0
        %2186 = vperm.xlu0 %2185, %v2152
        %v2187 = vpop.permute.xlu0 %2186
        %2190 = vset.pattern.permute.xlu0 0
        %2191 = vperm.xlu0 %2190, %v2153
        %v2192 = vpop.permute.xlu0 %2191
        %v2194 = vmul.f32 %v2138, %v2157
        %v2195 = vmul.f32 %v2139, %v2162
        %v2196 = vmul.f32 %v2140, %v2167
        %v2197 = vmul.f32 %v2141, %v2172
        %v2198 = vmul.f32 %v2142, %v2177
        %v2199 = vmul.f32 %v2143, %v2182
        %v2200 = vmul.f32 %v2144, %v2187
        %v2201 = vmul.f32 %v2145, %v2192
        %v2202 = vadd.f32 %v2194, %v2195
        %v2203 = vadd.f32 %v2202, %v2196
        %v2204 = vadd.f32 %v2203, %v2197
        %v2205 = vadd.f32 %v2204, %v2198
        %v2206 = vadd.f32 %v2205, %v2199
        %v2207 = vadd.f32 %v2206, %v2200
        %v2208 = vadd.f32 %v2207, %v2201
        %v2209 = vrot.slane %v2208, 4
        %v2210 = vadd.f32 %v2208, %v2209
        %v2211 = vrot.slane %v2210, 2
        %v2212 = vadd.f32 %v2210, %v2211
        %v2213 = vrot.slane %v2212, 1
        %v2214 = vadd.f32 %v2212, %v2213
        %v2215 = vld [vmem:[#allocation2] sm:$0x1]
        %2217 = vset.pattern.permute.xlu0 0
        %2218 = vperm.xlu0 %2217, %v2215
        %v2219 = vpop.permute.xlu0 %2218
        %v2221 = vlaneseq
        %v2222 = vshrl.u32 %v2221, 7
        %v2223 = vsub.s32 0, %v2222
        %v2224 = vrot.slane %v2219, %v2223
        %v2225 = vadd.f32 %v2214, %v2224
        %2226 = vst [vmem:[%s451] sm:$0x1] %v2225
        %s2227 = sand.u32 %s320, 1
        %s2228 = scalar_lea.sflag [#allocation4], %s2227
        %s2229 = sand.u32 %s320, 1
        %s2230 = scalar_lea.vmem [#allocation3], %s2229
        // Predicated region
        $region73: #{tpu_custom_call.1} parent=71 // pred_check
          %p2231 = pneg %p330
        $region74: #{tpu_custom_call.1} parent=71 // pred_check_branch
          %2233 = sbr.rel (%p2231) target = $region76
        $region75: #{tpu_custom_call.1} parent=71 // pred_region
          %s2235 = ssub.s32 16, 16
          %2236 = vsyncadd %s2228, %s2235
          %s2237 = smul.addr %s29, 16
          %s2238 = scalar_lea.hbm %s13, %s2237
          %s2240 = sshll.u32 %s2230, 4
          %s2241 = int_to_ptr.vmem [resolvable:$true] %s2240
          %2243 = dma.vmem_to_hbm [thread:$0]  %s2241, 16, %s2238, %s2228
        $region76: #{tpu_custom_call.1} parent=71 // pred_fallthru
          _
      $region72: #{tpu_custom_call.1} parent=5 // pred_fallthru
        _
      %p2244 = scmp.le.s32.totalorder 2, %s24
      // Predicated region
      $region77: #{tpu_custom_call.1} parent=5 // pred_check
        %p2245 = pneg %p2244
      $region78: #{tpu_custom_call.1} parent=5 // pred_check_branch
        %2247 = sbr.rel (%p2245) target = $region80
      $region79: #{tpu_custom_call.1} parent=5 // pred_region
        %s2248 = ssub.s32 %s24, 2
        // Predicated region
        $region81: #{tpu_custom_call.1} parent=79 // pred_check
          %p2249 = pneg %p336
        $region82: #{tpu_custom_call.1} parent=79 // pred_check_branch
          %2251 = sbr.rel (%p2249) target = $region84
        $region83: #{tpu_custom_call.1} parent=79 // pred_region
          %s2252 = sand.u32 %s321, 1
          %s2253 = scalar_lea.sflag [#allocation4], %s2252
          %s2254 = sand.u32 %s321, 1
          %s2255 = scalar_lea.vmem [#allocation3], %s2254
          %2256 = dma.done %s2253, 16
        $region84: #{tpu_custom_call.1} parent=79 // pred_fallthru
          _
      $region80: #{tpu_custom_call.1} parent=5 // pred_fallthru
        _
    $region6: #{tpu_custom_call.1} parent=1 // loop_footer
      %s28 = sadd.s32 1, %s24
    $region7: #{tpu_custom_call.1} parent=1 // loop_footer_branch
      %23 = sbr.rel target = $region3
    $region8: #{tpu_custom_call.1} parent=1 // loop_exit
      _
    %2257 = vsyncpa [#allocation4], 1
    %s2258 = scalar_lea.sflag [#allocation4], 1
    %2259 = vsyncpa %s2258, 1

</llo_original>
